<compile_context>
chip_gen: v7x
topology: tpu7x:2x2x1
jax: 0.10.0
libtpu: 0.0.40
codegen_flags: <defaults>
</compile_context>

<pallas_src>
import jax
import jax.numpy as jnp
from jax import lax
from jax.experimental import pallas as pl
from jax.experimental.pallas import tpu as pltpu


# Model dims: Conv2d(1, 20, 5) -> Conv2d(20, 20, 5), 'valid', stride 1.
KH, KW = 5, 5
C0 = 1    # input channels
C1 = 20   # conv1 output channels
C2 = 20   # conv2 output channels


def _round_up(x, m):
    return ((x + m - 1) // m) * m


def build_row_conv_matrix(w_hwio, wout):
    """Banded (Toeplitz) matrices turning a row-convolution into matmuls.

    w_hwio: (KH, KW, Cin, Cout).  Returns G of shape (KH, Win*Cin, Wout*Cout)
    with  G[kh, (w+kw)*Cin + cin, w*Cout + cout] = w[kh, kw, cin, cout]
    so that, with rows laid out as (pos*Cin + cin) on input and
    (w*Cout + cout) on output:
        out[h, :] = sum_kh  in[h + kh, :] @ G[kh]
    Built once in the wrapper (weight preprocessing), not inside the kernel.
    """
    kh_, kw_, cin_, cout_ = w_hwio.shape
    win = wout + kw_ - 1
    rows = jnp.arange(win * cin_)
    cols = jnp.arange(wout * cout_)
    in_pos, cin = rows // cin_, rows % cin_
    out_pos, cout = cols // cout_, cols % cout_
    kw = in_pos[:, None] - out_pos[None, :]                # (R, C)
    valid = (kw >= 0) & (kw < kw_)
    kw_c = jnp.clip(kw, 0, kw_ - 1)
    g = w_hwio[:, kw_c, cin[:, None], cout[None, :]]       # (KH, R, C)
    return jnp.where(valid[None], g, jnp.zeros((), w_hwio.dtype))


def pick_batch_tile(n, target=128):
    """Batch-tile size: keep grid >= 2 (feeds both v7x TCs), cap VMEM use."""
    if n <= 1:
        return 1
    return int(max(1, min(target, n // 2)))


def make_fused_lenet_head(n_pad, batch_tile, H, W, compute_dtype):
    """One pallas_call computing relu(conv2(relu(conv1(x)))) per batch tile."""
    Hout1, Wout1 = H - KH + 1, W - KW + 1            # 12, 12
    Hout2, Wout2 = Hout1 - KH + 1, Wout1 - KW + 1    # 8, 8
    L0 = W * C0                                      # 16
    K1 = KH * L0                                     # 80  (conv1 K, via im2row)
    K1P = _round_up(K1, 128)                         # 128
    L1P = _round_up(Wout1 * C1, 128)                 # 256 (conv1 row, padded)
    L2P = _round_up(Wout2 * C2, 128)                 # 256 (conv2 row, padded)
    H1P = _round_up(Hout1, 8)                        # 16  (sublane-aligned rows)
    B = batch_tile
    grid_n = n_pad // B

    def kernel(x_ref, g1_ref, b1_ref, g2_ref, b2_ref, o_ref, y1_ref):
        # ---- conv1 + bias + ReLU: ONE batch-stacked MXU matmul.
        # (B, H1P, K1P) -> (B*H1P, K1P) is tile-aligned (H1P multiple of 8) =>
        # a free layout no-op.
        lhs1 = x_ref[...].reshape(B * H1P, K1P)
        acc1 = jnp.dot(lhs1, g1_ref[...], preferred_element_type=jnp.float32)
        y1 = jnp.maximum(acc1 + b1_ref[...], 0.0)
        # intermediate stays resident in VMEM scratch (never touches HBM)
        y1_ref[...] = y1.reshape(B, H1P, L1P).astype(y1_ref.dtype)

        # ---- conv2 + bias + ReLU: KH taps, each a batch-stacked K=256 matmul.
        acc2 = jnp.zeros((B * Hout2, L2P), jnp.float32)
        for kh in range(KH):                               # static unroll
            lhs2 = y1_ref[:, kh:kh + Hout2, :].reshape(B * Hout2, L1P)
            acc2 = acc2 + jnp.dot(lhs2, g2_ref[kh],
                                  preferred_element_type=jnp.float32)
        out = jnp.maximum(acc2 + b2_ref[...], 0.0)
        # single lane-dense (256-wide) store of the whole per-tile output
        o_ref[...] = out.reshape(B, Hout2, L2P).astype(o_ref.dtype)

    itemsize = jnp.dtype(compute_dtype).itemsize
    flops = 2 * n_pad * (H1P * K1P * L1P + KH * Hout2 * L1P * L2P)
    bytes_accessed = (
        itemsize * (n_pad * H1P * K1P + K1P * L1P + KH * L1P * L2P)
        + 4 * (L1P + L2P + n_pad * Hout2 * L2P))
    cost = pl.CostEstimate(flops=flops, transcendentals=0,
                           bytes_accessed=bytes_accessed)

    return pl.pallas_call(
        kernel,
        out_shape=jax.ShapeDtypeStruct((n_pad, Hout2, L2P), jnp.float32),
        grid_spec=pltpu.PrefetchScalarGridSpec(
            num_scalar_prefetch=0,
            grid=(grid_n,),
            in_specs=[
                pl.BlockSpec((B, H1P, K1P), lambda n: (n, 0, 0)),    # x im2row
                pl.BlockSpec((K1P, L1P), lambda n: (0, 0)),          # G1
                pl.BlockSpec((1, L1P), lambda n: (0, 0)),            # bias1
                pl.BlockSpec((KH, L1P, L2P), lambda n: (0, 0, 0)),   # G2
                pl.BlockSpec((1, L2P), lambda n: (0, 0)),            # bias2
            ],
            out_specs=pl.BlockSpec((B, Hout2, L2P), lambda n: (n, 0, 0)),
            scratch_shapes=[pltpu.VMEM((B, H1P, L1P), compute_dtype)],  # y1
        ),
        compiler_params=pltpu.CompilerParams(
            dimension_semantics=("parallel",)),   # feeds both TCs on v7x
        cost_estimate=cost,
    )


def init_params(key):
    """Deterministic parameter init matching the PyTorch module's shapes."""
    k1, k2, k3, k4 = jax.random.split(key, 4)
    w1 = jax.random.normal(k1, (KH, KW, C0, C1), jnp.float32) * 0.1   # HWIO
    b1 = jax.random.normal(k2, (C1,), jnp.float32) * 0.1
    w2 = jax.random.normal(k3, (KH, KW, C1, C2), jnp.float32) * 0.05  # HWIO
    b2 = jax.random.normal(k4, (C2,), jnp.float32) * 0.05
    return w1, b1, w2, b2


def model_forward(x_nchw, params, *, use_bf16_matmul=False, batch_tile=None):
    """Forward pass. Input/output in PyTorch NCHW layout."""
    w1, b1, w2, b2 = params
    N, Cin, H, W = x_nchw.shape
    assert Cin == C0
    Hout1, Wout1 = H - KH + 1, W - KW + 1
    Hout2, Wout2 = Hout1 - KH + 1, Wout1 - KW + 1
    L0, L1, L2 = W * C0, Wout1 * C1, Wout2 * C2
    K1 = KH * L0
    K1P, L1P, L2P = _round_up(K1, 128), _round_up(L1, 128), _round_up(L2, 128)
    H1P = _round_up(Hout1, 8)

    # bf16 MXU inputs (f32 accumulation) are a v6e/v7x win; default f32 keeps
    # tight numerical parity with the reference.
    compute_dtype = jnp.bfloat16 if use_bf16_matmul else jnp.float32

    B = batch_tile if batch_tile is not None else pick_batch_tile(N)
    grid_n = pl.cdiv(N, B)
    n_pad = grid_n * B

    # ---- activations: NCHW -> NHWC rows -> H-direction im2row, padded ----
    x_rows = jnp.transpose(x_nchw, (0, 2, 3, 1)).reshape(N, H, L0)
    xi = jnp.concatenate(
        [x_rows[:, kh:kh + Hout1, :] for kh in range(KH)], axis=-1)  # (N,12,80)
    xi = jnp.pad(xi, ((0, n_pad - N), (0, H1P - Hout1), (0, K1P - K1)))
    xi = xi.astype(compute_dtype)

    # ---- weights: Toeplitz matrices, zero-padded to 128-multiple lanes ----
    g1 = build_row_conv_matrix(w1, Wout1).reshape(K1, L1)             # (80,240)
    g1 = jnp.pad(g1, ((0, K1P - K1), (0, L1P - L1))).astype(compute_dtype)
    g2 = build_row_conv_matrix(w2, Wout2)                             # (5,240,160)
    g2 = jnp.pad(g2, ((0, 0), (0, L1P - L1), (0, L2P - L2))).astype(compute_dtype)
    b1_flat = jnp.pad(jnp.tile(b1, Wout1), (0, L1P - L1)).reshape(1, L1P)
    b2_flat = jnp.pad(jnp.tile(b2, Wout2), (0, L2P - L2)).reshape(1, L2P)

    fused = make_fused_lenet_head(n_pad, B, H, W, compute_dtype)
    y2_rows = fused(xi, g1, b1_flat, g2, b2_flat)        # (n_pad, Hout2, L2P)

    # strip batch/lane padding, (N, Hout2, Wout2*C2) -> NHWC -> NCHW
    y2 = y2_rows[:N, :, :L2].reshape(N, Hout2, Wout2, C2)
    return jnp.transpose(y2, (0, 3, 1, 2))


def reference_forward(x_nchw, params):
    """Pure-JAX reference (lax.conv) for correctness checking."""
    w1, b1, w2, b2 = params
    x = jnp.transpose(x_nchw, (0, 2, 3, 1))
    dn = ("NHWC", "HWIO", "NHWC")
    y = lax.conv_general_dilated(x, w1, (1, 1), "VALID", dimension_numbers=dn)
    y = jnp.maximum(y + b1.reshape(1, 1, 1, -1), 0.0)
    y = lax.conv_general_dilated(y, w2, (1, 1), "VALID", dimension_numbers=dn)
    y = jnp.maximum(y + b2.reshape(1, 1, 1, -1), 0.0)
    return jnp.transpose(y, (0, 3, 1, 2))


if __name__ == "__main__":
    key = jax.random.PRNGKey(0)
    k_x, k_p = jax.random.split(key)

    # NCHW input consistent with Conv2d(1, 20, 5): (batch=2, C=1, 16, 16)
    x = jax.random.normal(k_x, (2, 1, 16, 16), jnp.float32)
    params = init_params(k_p)

    fwd = jax.jit(model_forward)
    out = jax.block_until_ready(fwd(x, params))
    assert out.shape == (2, 20, 8, 8), out.shape

    ref = jax.block_until_ready(reference_forward(x, params))
    max_err = float(jnp.max(jnp.abs(out - ref)))
    assert jnp.allclose(out, ref, atol=2e-4, rtol=2e-4), max_err

    print("KERNEL_OK")
</pallas_src>

<mosaic_0001>
module attributes {stable_mosaic.version = 11 : i64} {
  func.func @kernel(%arg0: i32, %arg1: memref<1x16x128xf32, #tpu.memory_space<vmem>>, %arg2: memref<128x256xf32, #tpu.memory_space<vmem>>, %arg3: memref<1x256xf32, #tpu.memory_space<vmem>>, %arg4: memref<5x256x256xf32, #tpu.memory_space<vmem>>, %arg5: memref<1x256xf32, #tpu.memory_space<vmem>>, %arg6: memref<1x8x256xf32, #tpu.memory_space<vmem>>, %arg7: memref<1x16x256xf32, #tpu.memory_space<vmem>>) attributes {dimension_semantics = [#tpu.dimension_semantics<parallel>], iteration_bounds = array<i64: 2>, scalar_prefetch = 0 : i64, scratch_operands = 1 : i64, tpu.core_type = #tpu.core_type<tc>, window_params = [{transform_indices = @transform_0, window_bounds = array<i64: 1, 16, 128>}, {pipeline_mode = #tpu.pipeline_mode<synchronous>, transform_indices = @transform_1, window_bounds = array<i64: 128, 256>}, {pipeline_mode = #tpu.pipeline_mode<synchronous>, transform_indices = @transform_2, window_bounds = array<i64: 1, 256>}, {pipeline_mode = #tpu.pipeline_mode<synchronous>, transform_indices = @transform_3, window_bounds = array<i64: 5, 256, 256>}, {pipeline_mode = #tpu.pipeline_mode<synchronous>, transform_indices = @transform_4, window_bounds = array<i64: 1, 256>}, {transform_indices = @transform_5, window_bounds = array<i64: 1, 8, 256>}]} {
    %c0 = arith.constant 0 : index
    %c0_0 = arith.constant 0 : index
    %c0_1 = arith.constant 0 : index
    %0 = vector.load %arg1[%c0, %c0_0, %c0_1] : memref<1x16x128xf32, #tpu.memory_space<vmem>>, vector<1x16x128xf32>
    %1 = vector.shape_cast %0 : vector<1x16x128xf32> to vector<16x128xf32>
    %c0_2 = arith.constant 0 : index
    %c0_3 = arith.constant 0 : index
    %2 = vector.load %arg2[%c0_2, %c0_3] : memref<128x256xf32, #tpu.memory_space<vmem>>, vector<128x256xf32>
    %cst = arith.constant dense<0.000000e+00> : vector<16x256xf32>
    %3 = tpu.matmul %1, %2, %cst {dimension_numbers = #tpu.dot_dimension_numbers<[1], [0], [0], [1], [0, 0, 1, 1], [], []>} : vector<16x128xf32>, vector<128x256xf32>, vector<16x256xf32> -> vector<16x256xf32>
    %c0_4 = arith.constant 0 : index
    %c0_5 = arith.constant 0 : index
    %4 = vector.load %arg3[%c0_4, %c0_5] : memref<1x256xf32, #tpu.memory_space<vmem>>, vector<1x256xf32>
    %5 = vector.broadcast %4 : vector<1x256xf32> to vector<16x256xf32>
    %6 = arith.addf %3, %5 : vector<16x256xf32>
    %cst_6 = arith.constant 0.000000e+00 : f32
    %7 = vector.broadcast %cst_6 : f32 to vector<16x256xf32>
    %8 = arith.maximumf %6, %7 : vector<16x256xf32>
    %9 = vector.shape_cast %8 : vector<16x256xf32> to vector<1x16x256xf32>
    %c0_7 = arith.constant 0 : index
    %c0_8 = arith.constant 0 : index
    %c0_9 = arith.constant 0 : index
    %10 = vector.load %arg7[%c0_7, %c0_8, %c0_9] : memref<1x16x256xf32, #tpu.memory_space<vmem>>, vector<1x16x256xf32>
    tpu.vector_store %arg7[%c0_7, %c0_8, %c0_9], %9 {strides = array<i32>} : memref<1x16x256xf32, #tpu.memory_space<vmem>>, vector<1x16x256xf32>,
    %cst_10 = arith.constant 0.000000e+00 : f32
    %11 = vector.broadcast %cst_10 : f32 to vector<8x256xf32>
    %c0_11 = arith.constant 0 : index
    %c0_12 = arith.constant 0 : index
    %c0_13 = arith.constant 0 : index
    %12 = vector.load %arg7[%c0_11, %c0_12, %c0_13] : memref<1x16x256xf32, #tpu.memory_space<vmem>>, vector<1x8x256xf32>
    %13 = vector.shape_cast %12 : vector<1x8x256xf32> to vector<8x256xf32>
    %c0_14 = arith.constant 0 : index
    %c0_15 = arith.constant 0 : index
    %c0_16 = arith.constant 0 : index
    %14 = vector.load %arg4[%c0_14, %c0_15, %c0_16] : memref<5x256x256xf32, #tpu.memory_space<vmem>>, vector<1x256x256xf32>
    %15 = vector.shape_cast %14 : vector<1x256x256xf32> to vector<256x256xf32>
    %cst_17 = arith.constant dense<0.000000e+00> : vector<8x256xf32>
    %16 = tpu.matmul %13, %15, %cst_17 {dimension_numbers = #tpu.dot_dimension_numbers<[1], [0], [0], [1], [0, 0, 1, 1], [], []>} : vector<8x256xf32>, vector<256x256xf32>, vector<8x256xf32> -> vector<8x256xf32>
    %17 = arith.addf %11, %16 : vector<8x256xf32>
    %c0_18 = arith.constant 0 : index
    %c1 = arith.constant 1 : index
    %c0_19 = arith.constant 0 : index
    %18 = vector.load %arg7[%c0_18, %c1, %c0_19] : memref<1x16x256xf32, #tpu.memory_space<vmem>>, vector<1x8x256xf32>
    %19 = vector.shape_cast %18 : vector<1x8x256xf32> to vector<8x256xf32>
    %c1_20 = arith.constant 1 : index
    %c0_21 = arith.constant 0 : index
    %c0_22 = arith.constant 0 : index
    %20 = vector.load %arg4[%c1_20, %c0_21, %c0_22] : memref<5x256x256xf32, #tpu.memory_space<vmem>>, vector<1x256x256xf32>
    %21 = vector.shape_cast %20 : vector<1x256x256xf32> to vector<256x256xf32>
    %cst_23 = arith.constant dense<0.000000e+00> : vector<8x256xf32>
    %22 = tpu.matmul %19, %21, %cst_23 {dimension_numbers = #tpu.dot_dimension_numbers<[1], [0], [0], [1], [0, 0, 1, 1], [], []>} : vector<8x256xf32>, vector<256x256xf32>, vector<8x256xf32> -> vector<8x256xf32>
    %23 = arith.addf %17, %22 : vector<8x256xf32>
    %c0_24 = arith.constant 0 : index
    %c2 = arith.constant 2 : index
    %c0_25 = arith.constant 0 : index
    %24 = vector.load %arg7[%c0_24, %c2, %c0_25] : memref<1x16x256xf32, #tpu.memory_space<vmem>>, vector<1x8x256xf32>
    %25 = vector.shape_cast %24 : vector<1x8x256xf32> to vector<8x256xf32>
    %c2_26 = arith.constant 2 : index
    %c0_27 = arith.constant 0 : index
    %c0_28 = arith.constant 0 : index
    %26 = vector.load %arg4[%c2_26, %c0_27, %c0_28] : memref<5x256x256xf32, #tpu.memory_space<vmem>>, vector<1x256x256xf32>
    %27 = vector.shape_cast %26 : vector<1x256x256xf32> to vector<256x256xf32>
    %cst_29 = arith.constant dense<0.000000e+00> : vector<8x256xf32>
    %28 = tpu.matmul %25, %27, %cst_29 {dimension_numbers = #tpu.dot_dimension_numbers<[1], [0], [0], [1], [0, 0, 1, 1], [], []>} : vector<8x256xf32>, vector<256x256xf32>, vector<8x256xf32> -> vector<8x256xf32>
    %29 = arith.addf %23, %28 : vector<8x256xf32>
    %c0_30 = arith.constant 0 : index
    %c3 = arith.constant 3 : index
    %c0_31 = arith.constant 0 : index
    %30 = vector.load %arg7[%c0_30, %c3, %c0_31] : memref<1x16x256xf32, #tpu.memory_space<vmem>>, vector<1x8x256xf32>
    %31 = vector.shape_cast %30 : vector<1x8x256xf32> to vector<8x256xf32>
    %c3_32 = arith.constant 3 : index
    %c0_33 = arith.constant 0 : index
    %c0_34 = arith.constant 0 : index
    %32 = vector.load %arg4[%c3_32, %c0_33, %c0_34] : memref<5x256x256xf32, #tpu.memory_space<vmem>>, vector<1x256x256xf32>
    %33 = vector.shape_cast %32 : vector<1x256x256xf32> to vector<256x256xf32>
    %cst_35 = arith.constant dense<0.000000e+00> : vector<8x256xf32>
    %34 = tpu.matmul %31, %33, %cst_35 {dimension_numbers = #tpu.dot_dimension_numbers<[1], [0], [0], [1], [0, 0, 1, 1], [], []>} : vector<8x256xf32>, vector<256x256xf32>, vector<8x256xf32> -> vector<8x256xf32>
    %35 = arith.addf %29, %34 : vector<8x256xf32>
    %c0_36 = arith.constant 0 : index
    %c4 = arith.constant 4 : index
    %c0_37 = arith.constant 0 : index
    %36 = vector.load %arg7[%c0_36, %c4, %c0_37] : memref<1x16x256xf32, #tpu.memory_space<vmem>>, vector<1x8x256xf32>
    %37 = vector.shape_cast %36 : vector<1x8x256xf32> to vector<8x256xf32>
    %c4_38 = arith.constant 4 : index
    %c0_39 = arith.constant 0 : index
    %c0_40 = arith.constant 0 : index
    %38 = vector.load %arg4[%c4_38, %c0_39, %c0_40] : memref<5x256x256xf32, #tpu.memory_space<vmem>>, vector<1x256x256xf32>
    %39 = vector.shape_cast %38 : vector<1x256x256xf32> to vector<256x256xf32>
    %cst_41 = arith.constant dense<0.000000e+00> : vector<8x256xf32>
    %40 = tpu.matmul %37, %39, %cst_41 {dimension_numbers = #tpu.dot_dimension_numbers<[1], [0], [0], [1], [0, 0, 1, 1], [], []>} : vector<8x256xf32>, vector<256x256xf32>, vector<8x256xf32> -> vector<8x256xf32>
    %41 = arith.addf %35, %40 : vector<8x256xf32>
    %c0_42 = arith.constant 0 : index
    %c0_43 = arith.constant 0 : index
    %42 = vector.load %arg5[%c0_42, %c0_43] : memref<1x256xf32, #tpu.memory_space<vmem>>, vector<1x256xf32>
    %43 = vector.broadcast %42 : vector<1x256xf32> to vector<8x256xf32>
    %44 = arith.addf %41, %43 : vector<8x256xf32>
    %cst_44 = arith.constant 0.000000e+00 : f32
    %45 = vector.broadcast %cst_44 : f32 to vector<8x256xf32>
    %46 = arith.maximumf %44, %45 : vector<8x256xf32>
    %47 = vector.shape_cast %46 : vector<8x256xf32> to vector<1x8x256xf32>
    %c0_45 = arith.constant 0 : index
    %c0_46 = arith.constant 0 : index
    %c0_47 = arith.constant 0 : index
    %48 = vector.load %arg6[%c0_45, %c0_46, %c0_47] : memref<1x8x256xf32, #tpu.memory_space<vmem>>, vector<1x8x256xf32>
    tpu.vector_store %arg6[%c0_45, %c0_46, %c0_47], %47 {strides = array<i32>} : memref<1x8x256xf32, #tpu.memory_space<vmem>>, vector<1x8x256xf32>,
    return
  }
  func.func @transform_0(%arg0: i32) -> (i32, i32, i32) {
    %c0_i32 = arith.constant 0 : i32
    %c0_i32_0 = arith.constant 0 : i32
    %c0_i32_1 = arith.constant 0 : i32
    return %arg0, %c0_i32, %c0_i32_0 : i32, i32, i32
  }
  func.func @transform_1(%arg0: i32) -> (i32, i32) {
    %c0_i32 = arith.constant 0 : i32
    %c0_i32_0 = arith.constant 0 : i32
    %c0_i32_1 = arith.constant 0 : i32
    return %c0_i32, %c0_i32_0 : i32, i32
  }
  func.func @transform_2(%arg0: i32) -> (i32, i32) {
    %c0_i32 = arith.constant 0 : i32
    %c0_i32_0 = arith.constant 0 : i32
    %c0_i32_1 = arith.constant 0 : i32
    return %c0_i32, %c0_i32_0 : i32, i32
  }
  func.func @transform_3(%arg0: i32) -> (i32, i32, i32) {
    %c0_i32 = arith.constant 0 : i32
    %c0_i32_0 = arith.constant 0 : i32
    %c0_i32_1 = arith.constant 0 : i32
    %c0_i32_2 = arith.constant 0 : i32
    return %c0_i32, %c0_i32_0, %c0_i32_1 : i32, i32, i32
  }
  func.func @transform_4(%arg0: i32) -> (i32, i32) {
    %c0_i32 = arith.constant 0 : i32
    %c0_i32_0 = arith.constant 0 : i32
    %c0_i32_1 = arith.constant 0 : i32
    return %c0_i32, %c0_i32_0 : i32, i32
  }
  func.func @transform_5(%arg0: i32) -> (i32, i32, i32) {
    %c0_i32 = arith.constant 0 : i32
    %c0_i32_0 = arith.constant 0 : i32
    %c0_i32_1 = arith.constant 0 : i32
    return %arg0, %c0_i32, %c0_i32_0 : i32, i32, i32
  }
}

</mosaic_0001>

<llo_original>
// kernel: tile.13
$region0: #{tile.13}
  #allocation0 [shape = 's32[1]{0}', space=sflag, size = 0x4, scoped, tag = 'scoped memory for tile.13']
  %s0 = inlined_call_operand.vmem [shape: f32[20], index: 0, kind: input, shape index: {}]
  %s1 = inlined_call_operand.vmem [shape: f32[12,20], index: 1, kind: output, shape index: {}]
  // Predicated region
  $region2: #{tile.13} parent=0 // pred_check
    _
  $region3: #{tile.13} parent=0 // pred_check_branch
    %3 = sbr.rel (0) target = $region5
  $region4: #{tile.13} parent=0 // pred_region
    _
  $region5: #{tile.13} parent=0 // pred_fallthru
    _
  %v4 = vld [vmem:[%s0] ss:$0 sm:$0xff]
  %5 = vst [vmem:[%s1] sm:$0xff] %v4
  %s6 = scalar_lea.vmem %s1, 8
  %7 = vst [vmem:[%s6] sm:$0xff] %v4

// kernel: tile.14
$region0: #{tile.14}
  %s0 = inlined_call_operand.vmem [shape: f32[12,20], index: 0, kind: input, shape index: {}]
  %s1 = inlined_call_operand.vmem [shape: f32[240], index: 1, kind: output, shape index: {}]
  $region1: #{tile.14} parent=0
    #allocation0 [shape = 'u8[4096]{0}', space=vmem, size = 0x1000, scoped, tag = 'scoped mem for output reshape']
    %v2 = vld [vmem:[%s0] sm:$0x1]
    %vm3 = vcmask 162816
    %4 = vst.msk [vmem:[#allocation0] sm:$0x1] %vm3, %v2
    %s5 = scalar_lea.vmem %s0, 6
    %v6 = vld [vmem:[%s5] sm:$0x1]
    %s7 = scalar_lea.vmem %s0, 6
    %v8 = vld [vmem:[%s7] sm:$0x1]
    %vm9 = vcmask 64512
    %v10 = vsel %vm9, %v8, %v6
    %11 = vrot.lane.b32.xlu0 %v10, 120
    %v12 = vpop.permute.xlu0 %11
    %vm13 = vcmask 97280
    %s14 = scalar_lea.vmem [#allocation0], 1
    %15 = vst.msk [vmem:[%s14] sm:$0x1] %vm13, %v12
    %vm16 = vcmask 1048512
    %17 = vst.msk [vmem:[#allocation0] sm:$0x1] %vm16, %v12
    %s18 = scalar_lea.vmem %s0, 5
    %v19 = vld [vmem:[%s18] sm:$0x1]
    %20 = vrot.lane.b32.xlu0 %v19, 100
    %v21 = vpop.permute.xlu0 %20
    %vm22 = vcmask 982816
    %23 = vst.msk [vmem:[#allocation0] sm:$0x1] %vm22, %v21
    %s24 = scalar_lea.vmem %s0, 11
    %v25 = vld [vmem:[%s24] sm:$0x1]
    %26 = vrot.lane.b32.xlu0 %v25, 92
    %v27 = vpop.permute.xlu0 %26
    %vm28 = vcmask 917216
    %s29 = scalar_lea.vmem [#allocation0], 1
    %30 = vst.msk [vmem:[%s29] sm:$0x1] %vm28, %v27
    %s31 = scalar_lea.vmem %s0, 4
    %v32 = vld [vmem:[%s31] sm:$0x1]
    %33 = vrot.lane.b32.xlu0 %v32, 80
    %v34 = vpop.permute.xlu0 %33
    %vm35 = vcmask 818816
    %36 = vst.msk [vmem:[#allocation0] sm:$0x1] %vm35, %v34
    %s37 = scalar_lea.vmem %s0, 10
    %v38 = vld [vmem:[%s37] sm:$0x1]
    %39 = vrot.lane.b32.xlu0 %v38, 72
    %v40 = vpop.permute.xlu0 %39
    %vm41 = vcmask 753216
    %s42 = scalar_lea.vmem [#allocation0], 1
    %43 = vst.msk [vmem:[%s42] sm:$0x1] %vm41, %v40
    %s44 = scalar_lea.vmem %s0, 3
    %v45 = vld [vmem:[%s44] sm:$0x1]
    %46 = vrot.lane.b32.xlu0 %v45, 60
    %v47 = vpop.permute.xlu0 %46
    %vm48 = vcmask 654816
    %49 = vst.msk [vmem:[#allocation0] sm:$0x1] %vm48, %v47
    %s50 = scalar_lea.vmem %s0, 9
    %v51 = vld [vmem:[%s50] sm:$0x1]
    %52 = vrot.lane.b32.xlu0 %v51, 52
    %v53 = vpop.permute.xlu0 %52
    %vm54 = vcmask 589216
    %s55 = scalar_lea.vmem [#allocation0], 1
    %56 = vst.msk [vmem:[%s55] sm:$0x1] %vm54, %v53
    %s57 = scalar_lea.vmem %s0, 2
    %v58 = vld [vmem:[%s57] sm:$0x1]
    %59 = vrot.lane.b32.xlu0 %v58, 40
    %v60 = vpop.permute.xlu0 %59
    %vm61 = vcmask 490816
    %62 = vst.msk [vmem:[#allocation0] sm:$0x1] %vm61, %v60
    %s63 = scalar_lea.vmem %s0, 8
    %v64 = vld [vmem:[%s63] sm:$0x1]
    %65 = vrot.lane.b32.xlu0 %v64, 32
    %v66 = vpop.permute.xlu0 %65
    %vm67 = vcmask 425216
    %s68 = scalar_lea.vmem [#allocation0], 1
    %69 = vst.msk [vmem:[%s68] sm:$0x1] %vm67, %v66
    %s70 = scalar_lea.vmem %s0, 1
    %v71 = vld [vmem:[%s70] sm:$0x1]
    %72 = vrot.lane.b32.xlu0 %v71, 20
    %v73 = vpop.permute.xlu0 %72
    %vm74 = vcmask 326816
    %75 = vst.msk [vmem:[#allocation0] sm:$0x1] %vm74, %v73
    %s76 = scalar_lea.vmem %s0, 7
    %v77 = vld [vmem:[%s76] sm:$0x1]
    %78 = vrot.lane.b32.xlu0 %v77, 12
    %v79 = vpop.permute.xlu0 %78
    %vm80 = vcmask 261216
    %s81 = scalar_lea.vmem [#allocation0], 1
    %82 = vst.msk [vmem:[%s81] sm:$0x1] %vm80, %v79
    %s84 = sshllo.u32 0, 2
    %v86 = vld [vmem:[#allocation0] sm:%s84]
    %s87 = sshllo.u32 0, 2
    %88 = vst [vmem:[%s1] sm:%s87] %v86

// kernel: tile.18
$region0: #{tile.18}
  #allocation0 [shape = 's32[1]{0}', space=sflag, size = 0x4, scoped, tag = 'scoped memory for tile.18']
  %s0 = inlined_call_operand.vmem [shape: f32[20], index: 0, kind: input, shape index: {}]
  %s1 = inlined_call_operand.vmem [shape: f32[8,20], index: 1, kind: output, shape index: {}]
  // Predicated region
  $region2: #{tile.18} parent=0 // pred_check
    _
  $region3: #{tile.18} parent=0 // pred_check_branch
    %3 = sbr.rel (0) target = $region5
  $region4: #{tile.18} parent=0 // pred_region
    _
  $region5: #{tile.18} parent=0 // pred_fallthru
    _
  %v4 = vld [vmem:[%s0] ss:$0 sm:$0xff]
  %5 = vst [vmem:[%s1] sm:$0xff] %v4

// kernel: tile.19
$region0: #{tile.19}
  %s0 = inlined_call_operand.vmem [shape: f32[8,20], index: 0, kind: input, shape index: {}]
  %s1 = inlined_call_operand.vmem [shape: f32[160], index: 1, kind: output, shape index: {}]
  $region1: #{tile.19} parent=0
    #allocation0 [shape = 'u8[4096]{0}', space=vmem, size = 0x1000, scoped, tag = 'scoped mem for output reshape']
    %v2 = vld [vmem:[%s0] sm:$0x1]
    %vm3 = vcmask 162816
    %4 = vst.msk [vmem:[#allocation0] sm:$0x1] %vm3, %v2
    %s5 = scalar_lea.vmem %s0, 6
    %v6 = vld [vmem:[%s5] sm:$0x1]
    %s7 = scalar_lea.vmem %s0, 6
    %v8 = vld [vmem:[%s7] sm:$0x1]
    %vm9 = vcmask 64512
    %v10 = vsel %vm9, %v8, %v6
    %11 = vrot.lane.b32.xlu0 %v10, 120
    %v12 = vpop.permute.xlu0 %11
    %vm13 = vcmask 97280
    %s14 = scalar_lea.vmem [#allocation0], 1
    %15 = vst.msk [vmem:[%s14] sm:$0x1] %vm13, %v12
    %vm16 = vcmask 1048512
    %17 = vst.msk [vmem:[#allocation0] sm:$0x1] %vm16, %v12
    %s18 = scalar_lea.vmem %s0, 5
    %v19 = vld [vmem:[%s18] sm:$0x1]
    %20 = vrot.lane.b32.xlu0 %v19, 100
    %v21 = vpop.permute.xlu0 %20
    %vm22 = vcmask 982816
    %23 = vst.msk [vmem:[#allocation0] sm:$0x1] %vm22, %v21
    %s24 = scalar_lea.vmem %s0, 4
    %v25 = vld [vmem:[%s24] sm:$0x1]
    %26 = vrot.lane.b32.xlu0 %v25, 80
    %v27 = vpop.permute.xlu0 %26
    %vm28 = vcmask 818816
    %29 = vst.msk [vmem:[#allocation0] sm:$0x1] %vm28, %v27
    %s30 = scalar_lea.vmem %s0, 3
    %v31 = vld [vmem:[%s30] sm:$0x1]
    %32 = vrot.lane.b32.xlu0 %v31, 60
    %v33 = vpop.permute.xlu0 %32
    %vm34 = vcmask 654816
    %35 = vst.msk [vmem:[#allocation0] sm:$0x1] %vm34, %v33
    %s36 = scalar_lea.vmem %s0, 2
    %v37 = vld [vmem:[%s36] sm:$0x1]
    %38 = vrot.lane.b32.xlu0 %v37, 40
    %v39 = vpop.permute.xlu0 %38
    %vm40 = vcmask 490816
    %41 = vst.msk [vmem:[#allocation0] sm:$0x1] %vm40, %v39
    %s42 = scalar_lea.vmem %s0, 1
    %v43 = vld [vmem:[%s42] sm:$0x1]
    %44 = vrot.lane.b32.xlu0 %v43, 20
    %v45 = vpop.permute.xlu0 %44
    %vm46 = vcmask 326816
    %47 = vst.msk [vmem:[#allocation0] sm:$0x1] %vm46, %v45
    %s48 = scalar_lea.vmem %s0, 7
    %v49 = vld [vmem:[%s48] sm:$0x1]
    %50 = vrot.lane.b32.xlu0 %v49, 12
    %v51 = vpop.permute.xlu0 %50
    %vm52 = vcmask 261216
    %s53 = scalar_lea.vmem [#allocation0], 1
    %54 = vst.msk [vmem:[%s53] sm:$0x1] %vm52, %v51
    %s56 = sshllo.u32 0, 2
    %v58 = vld [vmem:[#allocation0] sm:%s56]
    %s59 = sshllo.u32 0, 2
    %60 = vst [vmem:[%s1] sm:%s59] %v58

// kernel: model_forward.1
$region0: #{model_forward.1}
  #allocation0 [shape = 'u32[]', space=smem, size = 0x4, offset = 0x4, fixed_abs, tag = 'smem constant byte address 0x4 - core index']
  #allocation1 [shape = 'u32[144,128]{1,0:T(1,128)}', space=vmem, size = 0x12000, scoped, tag = 'internal scratch']
  #allocation2 [shape = 'f32[1,16,256]{2,1,0:T(8,128)}', space=vmem, size = 0x4000, scoped, tag = 'scratch operand']
  %s0 = inlined_call_operand.vmem [shape: f32[2,16,128], index: 0, kind: input, shape index: {}]
  %s1 = inlined_call_operand.vmem [shape: f32[128,256], index: 1, kind: input, shape index: {}]
  %s2 = inlined_call_operand.vmem [shape: f32[1,256], index: 2, kind: input, shape index: {}]
  %s3 = inlined_call_operand.vmem [shape: f32[5,256,256], index: 3, kind: input, shape index: {}]
  %s4 = inlined_call_operand.vmem [shape: f32[1,256], index: 4, kind: input, shape index: {}]
  %s5 = inlined_call_operand.vmem [shape: f32[2,8,256], index: 5, kind: output, shape index: {}]
  %s6 = sld [smem:[#allocation0]]
  $region53: #{model_forward.1} parent=0
    _
  %s8 = ssub.s32 1, %s6
  %s9 = scalar_select 0, %s8, %s6
  loop: start=0, step=1, limit=4
  $region2: #{model_forward.1} parent=0 // loop_pre_header
    _
  $region3: #{model_forward.1} parent=0 // loop_header
    %s11 = sphi 0, %s15
    %p12 = scmp.ge.s32.totalorder %s11, 4
    %s21 = sphi 0, %s23
    %s24 = sphi 0, %s21
    %s25 = sphi 0, %s24
    %s41 = sphi 0, %s25
    %s45 = sphi 0, %s45
    %s47 = sphi 0, %s45
    %s48 = sphi 0, %s47
    %s62 = sphi 0, %s48
    %s66 = sphi 0, %s66
    %s68 = sphi 0, %s66
    %s69 = sphi 0, %s68
    %s83 = sphi 0, %s69
    %s87 = sphi 0, %s87
    %s89 = sphi 0, %s87
    %s90 = sphi 0, %s89
    %s104 = sphi 0, %s90
    %s108 = sphi 0, %s108
    %s110 = sphi 0, %s108
    %s111 = sphi 0, %s110
    %s125 = sphi 0, %s111
    %s131 = sphi 0, %s133
    %s134 = sphi 0, %s131
    %s135 = sphi 0, %s134
    %s151 = sphi 0, %s135
  $region4: #{model_forward.1} parent=0 // loop_header_branch
    %14 = sbr.rel (%p12) target = $region8
  $region5: #{model_forward.1} parent=0 // loop_body
    %s16 = ssub.s32 %s11, 1
    %s17 = ssub.s32 %s11, 2
    %s18 = sadd.s32 %s11, 1
    %s19 = ssub.s32 %s11, %s18
    %p20 = scmp.eq.s32.totalorder %s19, 0
    %s22 = sadd.s32 %s21, 1
    %s23 = scalar_select %p20, %s21, %s22
    %p26 = pneg %p20
    %p27 = scmp.eq.s32.totalorder %s11, 1
    %p28 = por %p26, %p27
    %p29 = scmp.ne.s32.totalorder %s21, %s24
    %p30 = scmp.eq.s32.totalorder %s11, 0
    %p31 = por %p29, %p30
    %p32 = scmp.ne.s32.totalorder %s21, %s24
    %p33 = scmp.eq.s32.totalorder %s16, 1
    %p34 = por %p32, %p33
    %p35 = scmp.ne.s32.totalorder %s24, %s25
    %p36 = scmp.eq.s32.totalorder %s16, 0
    %p37 = por %p35, %p36
    %p38 = scmp.ne.s32.totalorder %s24, %s25
    %p39 = scmp.eq.s32.totalorder %s17, 1
    %p40 = por %p38, %p39
    %p42 = scmp.ne.s32.totalorder %s25, %s41
    %p43 = scmp.eq.s32.totalorder %s17, 0
    %p44 = por %p42, %p43
    %s46 = sadd.s32 %s45, 1
    %p49 = scmp.eq.s32.totalorder %s11, 1
    %p50 = scmp.ne.s32.totalorder %s45, %s47
    %p51 = scmp.eq.s32.totalorder %s11, 0
    %p52 = por %p50, %p51
    %p53 = scmp.ne.s32.totalorder %s45, %s47
    %p54 = scmp.eq.s32.totalorder %s16, 1
    %p55 = por %p53, %p54
    %p56 = scmp.ne.s32.totalorder %s47, %s48
    %p57 = scmp.eq.s32.totalorder %s16, 0
    %p58 = por %p56, %p57
    %p59 = scmp.ne.s32.totalorder %s47, %s48
    %p60 = scmp.eq.s32.totalorder %s17, 1
    %p61 = por %p59, %p60
    %p63 = scmp.ne.s32.totalorder %s48, %s62
    %p64 = scmp.eq.s32.totalorder %s17, 0
    %p65 = por %p63, %p64
    %s67 = sadd.s32 %s66, 1
    %p70 = scmp.eq.s32.totalorder %s11, 1
    %p71 = scmp.ne.s32.totalorder %s66, %s68
    %p72 = scmp.eq.s32.totalorder %s11, 0
    %p73 = por %p71, %p72
    %p74 = scmp.ne.s32.totalorder %s66, %s68
    %p75 = scmp.eq.s32.totalorder %s16, 1
    %p76 = por %p74, %p75
    %p77 = scmp.ne.s32.totalorder %s68, %s69
    %p78 = scmp.eq.s32.totalorder %s16, 0
    %p79 = por %p77, %p78
    %p80 = scmp.ne.s32.totalorder %s68, %s69
    %p81 = scmp.eq.s32.totalorder %s17, 1
    %p82 = por %p80, %p81
    %p84 = scmp.ne.s32.totalorder %s69, %s83
    %p85 = scmp.eq.s32.totalorder %s17, 0
    %p86 = por %p84, %p85
    %s88 = sadd.s32 %s87, 1
    %p91 = scmp.eq.s32.totalorder %s11, 1
    %p92 = scmp.ne.s32.totalorder %s87, %s89
    %p93 = scmp.eq.s32.totalorder %s11, 0
    %p94 = por %p92, %p93
    %p95 = scmp.ne.s32.totalorder %s87, %s89
    %p96 = scmp.eq.s32.totalorder %s16, 1
    %p97 = por %p95, %p96
    %p98 = scmp.ne.s32.totalorder %s89, %s90
    %p99 = scmp.eq.s32.totalorder %s16, 0
    %p100 = por %p98, %p99
    %p101 = scmp.ne.s32.totalorder %s89, %s90
    %p102 = scmp.eq.s32.totalorder %s17, 1
    %p103 = por %p101, %p102
    %p105 = scmp.ne.s32.totalorder %s90, %s104
    %p106 = scmp.eq.s32.totalorder %s17, 0
    %p107 = por %p105, %p106
    %s109 = sadd.s32 %s108, 1
    %p112 = scmp.eq.s32.totalorder %s11, 1
    %p113 = scmp.ne.s32.totalorder %s108, %s110
    %p114 = scmp.eq.s32.totalorder %s11, 0
    %p115 = por %p113, %p114
    %p116 = scmp.ne.s32.totalorder %s108, %s110
    %p117 = scmp.eq.s32.totalorder %s16, 1
    %p118 = por %p116, %p117
    %p119 = scmp.ne.s32.totalorder %s110, %s111
    %p120 = scmp.eq.s32.totalorder %s16, 0
    %p121 = por %p119, %p120
    %p122 = scmp.ne.s32.totalorder %s110, %s111
    %p123 = scmp.eq.s32.totalorder %s17, 1
    %p124 = por %p122, %p123
    %p126 = scmp.ne.s32.totalorder %s111, %s125
    %p127 = scmp.eq.s32.totalorder %s17, 0
    %p128 = por %p126, %p127
    %s129 = ssub.s32 %s11, %s18
    %p130 = scmp.eq.s32.totalorder %s129, 0
    %s132 = sadd.s32 %s131, 1
    %s133 = scalar_select %p130, %s131, %s132
    %p136 = pneg %p130
    %p137 = scmp.eq.s32.totalorder %s11, 1
    %p138 = por %p136, %p137
    %p139 = scmp.ne.s32.totalorder %s131, %s134
    %p140 = scmp.eq.s32.totalorder %s11, 0
    %p141 = por %p139, %p140
    %p142 = scmp.ne.s32.totalorder %s131, %s134
    %p143 = scmp.eq.s32.totalorder %s16, 1
    %p144 = por %p142, %p143
    %p145 = scmp.ne.s32.totalorder %s134, %s135
    %p146 = scmp.eq.s32.totalorder %s16, 0
    %p147 = por %p145, %p146
    %p148 = scmp.ne.s32.totalorder %s134, %s135
    %p149 = scmp.eq.s32.totalorder %s17, 1
    %p150 = por %p148, %p149
    %p152 = scmp.ne.s32.totalorder %s135, %s151
    %p153 = scmp.eq.s32.totalorder %s17, 0
    %p154 = por %p152, %p153
    %p155 = scmp.le.s32.totalorder 1, %s11
    %p156 = scmp.lt.s32.totalorder %s11, 3
    %p157 = pnand %p155, %p156
    %p158 = pneg %p157
    // Predicated region
    $region9: #{model_forward.1} parent=5 // pred_check
      _
    $region10: #{model_forward.1} parent=5 // pred_check_branch
      %160 = sbr.rel (%p157) target = $region12
    $region11: #{model_forward.1} parent=5 // pred_region
      %s161 = ssub.s32 %s11, 1
      // Predicated region
      $region13: #{model_forward.1} parent=11 // pred_check
        %p162 = pneg %p58
      $region14: #{model_forward.1} parent=11 // pred_check_branch
        %164 = sbr.rel (%p162) target = $region16
      $region15: #{model_forward.1} parent=11 // pred_region
        _
      $region16: #{model_forward.1} parent=11 // pred_fallthru
        _
      // Predicated region
      $region17: #{model_forward.1} parent=11 // pred_check
        %p165 = pneg %p79
      $region18: #{model_forward.1} parent=11 // pred_check_branch
        %167 = sbr.rel (%p165) target = $region20
      $region19: #{model_forward.1} parent=11 // pred_region
        _
      $region20: #{model_forward.1} parent=11 // pred_fallthru
        _
      // Predicated region
      $region21: #{model_forward.1} parent=11 // pred_check
        %p168 = pneg %p100
      $region22: #{model_forward.1} parent=11 // pred_check_branch
        %170 = sbr.rel (%p168) target = $region24
      $region23: #{model_forward.1} parent=11 // pred_region
        _
      $region24: #{model_forward.1} parent=11 // pred_fallthru
        _
      // Predicated region
      $region25: #{model_forward.1} parent=11 // pred_check
        %p171 = pneg %p121
      $region26: #{model_forward.1} parent=11 // pred_check_branch
        %173 = sbr.rel (%p171) target = $region28
      $region27: #{model_forward.1} parent=11 // pred_region
        _
      $region28: #{model_forward.1} parent=11 // pred_fallthru
        _
    $region12: #{model_forward.1} parent=5 // pred_fallthru
      _
    %p174 = scmp.lt.s32.totalorder %s11, 2
    // Predicated region
    $region29: #{model_forward.1} parent=5 // pred_check
      %p175 = pneg %p174
    $region30: #{model_forward.1} parent=5 // pred_check_branch
      %177 = sbr.rel (%p175) target = $region32
    $region31: #{model_forward.1} parent=5 // pred_region
      // Predicated region
      $region33: #{model_forward.1} parent=31 // pred_check
        %p178 = pneg %p31
      $region34: #{model_forward.1} parent=31 // pred_check_branch
        %180 = sbr.rel (%p178) target = $region36
      $region35: #{model_forward.1} parent=31 // pred_region
        %p181 = scmp.lt.s32.totalorder %s11, 1
        %s182 = scalar_select %p181, %s11, 1
        %s183 = smul.addr %s182, 2
        %s184 = smul.addr %s183, 8
        %s185 = scalar_lea.vmem %s0, %s184
      $region36: #{model_forward.1} parent=31 // pred_fallthru
        _
    $region32: #{model_forward.1} parent=5 // pred_fallthru
      _
    %p186 = scmp.le.s32.totalorder 1, %s11
    %p187 = scmp.lt.s32.totalorder %s11, 3
    %p188 = pnand %p186, %p187
    %p189 = pneg %p188
    // Predicated region
    $region37: #{model_forward.1} parent=5 // pred_check
      _
    $region38: #{model_forward.1} parent=5 // pred_check_branch
      %191 = sbr.rel (%p188) target = $region40
    $region39: #{model_forward.1} parent=5 // pred_region
      %s192 = ssub.s32 %s11, 1
      %p193 = scmp.lt.s32.totalorder %s16, 1
      %s194 = scalar_select %p193, %s16, 1
      %s195 = smul.addr %s194, 2
      %s196 = smul.addr %s195, 8
      %s197 = scalar_lea.vmem %s0, %s196
      %p198 = pneg %p37
      %p199 = pneg %p34
      %p200 = pneg %p58
      %p201 = pneg %p55
      %p202 = pneg %p79
      %p203 = pneg %p76
      %p204 = pneg %p100
      %p205 = pneg %p97
      %p206 = pneg %p121
      %p207 = pneg %p118
      %p208 = pneg %p147
      %p209 = pneg %p144
      %p210 = scmp.lt.s32.totalorder %s16, 1
      %s211 = scalar_select %p210, %s16, 1
      %s212 = smul.addr %s211, 2
      %s213 = smul.addr %s212, 8
      %s214 = scalar_lea.vmem %s5, %s213
      %p215 = scmp.lt.s32.totalorder %s16, 1
      %s216 = scalar_select %p215, %s16, 1
      %s217 = smul.addr %s216, 2
      %s218 = smul.addr %s217, 8
      %s219 = scalar_lea.vmem %s0, %s218
      %p220 = scmp.lt.s32.totalorder %s16, 1
      %s221 = scalar_select %p220, %s16, 1
      %s222 = smul.addr %s221, 2
      %s223 = smul.addr %s222, 8
      %s224 = scalar_lea.vmem %s5, %s223
      %v225 = vld [vmem:[%s219] sm:$0xff]
      %v226 = vld [vmem:[%s219 + $0x8] sm:$0xff]
      %v227 = vld [vmem:[%s1] sm:$0xff]
      %v228 = vld [vmem:[%s1 + $0x8] sm:$0xff]
      %v229 = vld [vmem:[%s1 + $0x10] sm:$0xff]
      %v230 = vld [vmem:[%s1 + $0x18] sm:$0xff]
      %v231 = vld [vmem:[%s1 + $0x20] sm:$0xff]
      %v232 = vld [vmem:[%s1 + $0x28] sm:$0xff]
      %v233 = vld [vmem:[%s1 + $0x30] sm:$0xff]
      %v234 = vld [vmem:[%s1 + $0x38] sm:$0xff]
      %v235 = vld [vmem:[%s1 + $0x40] sm:$0xff]
      %v236 = vld [vmem:[%s1 + $0x48] sm:$0xff]
      %v237 = vld [vmem:[%s1 + $0x50] sm:$0xff]
      %v238 = vld [vmem:[%s1 + $0x58] sm:$0xff]
      %v239 = vld [vmem:[%s1 + $0x60] sm:$0xff]
      %v240 = vld [vmem:[%s1 + $0x68] sm:$0xff]
      %v241 = vld [vmem:[%s1 + $0x70] sm:$0xff]
      %v242 = vld [vmem:[%s1 + $0x78] sm:$0xff]
      %v243 = vld [vmem:[%s1 + $0x80] sm:$0xff]
      %v244 = vld [vmem:[%s1 + $0x88] sm:$0xff]
      %v245 = vld [vmem:[%s1 + $0x90] sm:$0xff]
      %v246 = vld [vmem:[%s1 + $0x98] sm:$0xff]
      %v247 = vld [vmem:[%s1 + $0xa0] sm:$0xff]
      %v248 = vld [vmem:[%s1 + $0xa8] sm:$0xff]
      %v249 = vld [vmem:[%s1 + $0xb0] sm:$0xff]
      %v250 = vld [vmem:[%s1 + $0xb8] sm:$0xff]
      %v251 = vld [vmem:[%s1 + $0xc0] sm:$0xff]
      %v252 = vld [vmem:[%s1 + $0xc8] sm:$0xff]
      %v253 = vld [vmem:[%s1 + $0xd0] sm:$0xff]
      %v254 = vld [vmem:[%s1 + $0xd8] sm:$0xff]
      %v255 = vld [vmem:[%s1 + $0xe0] sm:$0xff]
      %v256 = vld [vmem:[%s1 + $0xe8] sm:$0xff]
      %v257 = vld [vmem:[%s1 + $0xf0] sm:$0xff]
      %v258 = vld [vmem:[%s1 + $0xf8] sm:$0xff]
      %v259 = vld [vmem:[%s2] sm:$0x3]
      %v261 = vlaneseq
      %v262 = vshrl.u32 %v261, 7
      %v263 = vsub.s32 0, %v262
      %v264 = vrot.slane %v259, %v263
      %v265 = vlaneseq
      %v266 = vshrl.u32 %v265, 7
      %v267 = vsub.s32 1, %v266
      %v268 = vrot.slane %v259, %v267
      %271 = vmatprep.subr.mxu0 %v228
      %272 = vmatpush1.msra.mxu0 %v227
      %273 = vmatprep.subr.mxu0 %v230
      %274 = vmatpush1.msra.mxu0 %v229
      %275 = vmatprep.subr.mxu0 %v232
      %276 = vmatpush1.msra.mxu0 %v231
      %277 = vmatprep.subr.mxu0 %v234
      %278 = vmatpush1.msra.mxu0 %v233
      %279 = vmatprep.subr.mxu0 %v236
      %280 = vmatpush1.msra.mxu0 %v235
      %281 = vmatprep.subr.mxu0 %v238
      %282 = vmatpush1.msra.mxu0 %v237
      %283 = vmatprep.subr.mxu0 %v240
      %284 = vmatpush1.msra.mxu0 %v239
      %285 = vmatprep.subr.mxu0 %v242
      %286 = vmatpush1.msra.mxu0 %v241
      %287 = vmatprep.subr.mxu0 %v244
      %288 = vmatpush1.msra.mxu0 %v243
      %289 = vmatprep.subr.mxu0 %v246
      %290 = vmatpush1.msra.mxu0 %v245
      %291 = vmatprep.subr.mxu0 %v248
      %292 = vmatpush1.msra.mxu0 %v247
      %293 = vmatprep.subr.mxu0 %v250
      %294 = vmatpush1.msra.mxu0 %v249
      %295 = vmatprep.subr.mxu0 %v252
      %296 = vmatpush1.msra.mxu0 %v251
      %297 = vmatprep.subr.mxu0 %v254
      %298 = vmatpush1.msra.mxu0 %v253
      %299 = vmatprep.subr.mxu0 %v256
      %300 = vmatpush1.msra.mxu0 %v255
      %301 = vmatprep.subr.mxu0 %v258
      %302 = vmatpush1.msra.mxu0 %v257
      %303 = vmatprep.subr.mxu0 0.0
      %304 = vmatpush1.msra.mxu0 0.0
      %305 = vmatprep.subr.mxu0 0.0
      %306 = vmatpush1.msra.mxu0 0.0
      %307 = vmatprep.subr.mxu0 0.0
      %308 = vmatpush1.msra.mxu0 0.0
      %309 = vmatprep.subr.mxu0 0.0
      %310 = vmatpush1.msra.mxu0 0.0
      %311 = vmatprep.subr.mxu0 0.0
      %312 = vmatpush1.msra.mxu0 0.0
      %313 = vmatprep.subr.mxu0 0.0
      %314 = vmatpush1.msra.mxu0 0.0
      %315 = vmatprep.subr.mxu0 0.0
      %316 = vmatpush1.msra.mxu0 0.0
      %317 = vmatprep.subr.mxu0 0.0
      %318 = vmatpush1.msra.mxu0 0.0
      %319 = vmatprep.subr.mxu0 0.0
      %320 = vmatpush1.msra.mxu0 0.0
      %321 = vmatprep.subr.mxu0 0.0
      %322 = vmatpush1.msra.mxu0 0.0
      %323 = vmatprep.subr.mxu0 0.0
      %324 = vmatpush1.msra.mxu0 0.0
      %325 = vmatprep.subr.mxu0 0.0
      %326 = vmatpush1.msra.mxu0 0.0
      %327 = vmatprep.subr.mxu0 0.0
      %328 = vmatpush1.msra.mxu0 0.0
      %329 = vmatprep.subr.mxu0 0.0
      %330 = vmatpush1.msra.mxu0 0.0
      %331 = vmatprep.subr.mxu0 0.0
      %332 = vmatpush1.msra.mxu0 0.0
      %333 = vmatprep.subr.mxu0 0.0
      %334 = vmatpush1.msra.mxu0 0.0
      %335 = vmatprep.mubr.f32.mxu0 0.0
      %336 = vmatmul.mubr.f32.gmra.mrb[0].mxu0 %v225
      %v337 = vpop.f32.mrb[0].mxu0
      %v338 = vadd.f32 %v264, %v337
      %v339 = vpop.f32.mrb[0].mxu0
      %v340 = vadd.f32 %v268, %v339
      %341 = vmatprep.mubr.f32.mxu0 0.0
      %342 = vmatmul.mubr.f32.gmra.mrb[0].mxu0 %v226
      %v343 = vpop.f32.mrb[0].mxu0
      %v344 = vadd.f32 %v264, %v343
      %v345 = vpop.f32.mrb[0].mxu0
      %v346 = vadd.f32 %v268, %v345
      %347 = vdwg.mxu0
      %v348 = vmax.f32 %v338, 0.0
      %v349 = vmax.f32 %v340, 0.0
      %v350 = vmax.f32 %v344, 0.0
      %v351 = vmax.f32 %v346, 0.0
      %352 = vst [vmem:[#allocation2] sm:$0xff] %v348
      %353 = vst [vmem:[#allocation2 + $0x8] sm:$0xff] %v349
      %354 = vst [vmem:[#allocation2 + $0x10] sm:$0xff] %v350
      %355 = vst [vmem:[#allocation2 + $0x18] sm:$0xff] %v351
      %v356 = vld [vmem:[#allocation2] sm:$0xff]
      %v357 = vld [vmem:[#allocation2 + $0x8] sm:$0xff]
      %v358 = vld [vmem:[%s3] sm:$0xff]
      %v359 = vld [vmem:[%s3 + $0x8] sm:$0xff]
      %v360 = vld [vmem:[%s3 + $0x10] sm:$0xff]
      %v361 = vld [vmem:[%s3 + $0x18] sm:$0xff]
      %v362 = vld [vmem:[%s3 + $0x20] sm:$0xff]
      %v363 = vld [vmem:[%s3 + $0x28] sm:$0xff]
      %v364 = vld [vmem:[%s3 + $0x30] sm:$0xff]
      %v365 = vld [vmem:[%s3 + $0x38] sm:$0xff]
      %v366 = vld [vmem:[%s3 + $0x40] sm:$0xff]
      %v367 = vld [vmem:[%s3 + $0x48] sm:$0xff]
      %v368 = vld [vmem:[%s3 + $0x50] sm:$0xff]
      %v369 = vld [vmem:[%s3 + $0x58] sm:$0xff]
      %v370 = vld [vmem:[%s3 + $0x60] sm:$0xff]
      %v371 = vld [vmem:[%s3 + $0x68] sm:$0xff]
      %v372 = vld [vmem:[%s3 + $0x70] sm:$0xff]
      %v373 = vld [vmem:[%s3 + $0x78] sm:$0xff]
      %v374 = vld [vmem:[%s3 + $0x80] sm:$0xff]
      %v375 = vld [vmem:[%s3 + $0x88] sm:$0xff]
      %v376 = vld [vmem:[%s3 + $0x90] sm:$0xff]
      %v377 = vld [vmem:[%s3 + $0x98] sm:$0xff]
      %v378 = vld [vmem:[%s3 + $0xa0] sm:$0xff]
      %v379 = vld [vmem:[%s3 + $0xa8] sm:$0xff]
      %v380 = vld [vmem:[%s3 + $0xb0] sm:$0xff]
      %v381 = vld [vmem:[%s3 + $0xb8] sm:$0xff]
      %v382 = vld [vmem:[%s3 + $0xc0] sm:$0xff]
      %v383 = vld [vmem:[%s3 + $0xc8] sm:$0xff]
      %v384 = vld [vmem:[%s3 + $0xd0] sm:$0xff]
      %v385 = vld [vmem:[%s3 + $0xd8] sm:$0xff]
      %v386 = vld [vmem:[%s3 + $0xe0] sm:$0xff]
      %v387 = vld [vmem:[%s3 + $0xe8] sm:$0xff]
      %v388 = vld [vmem:[%s3 + $0xf0] sm:$0xff]
      %v389 = vld [vmem:[%s3 + $0xf8] sm:$0xff]
      %v390 = vld [vmem:[%s3 + $0x100] sm:$0xff]
      %v391 = vld [vmem:[%s3 + $0x108] sm:$0xff]
      %v392 = vld [vmem:[%s3 + $0x110] sm:$0xff]
      %v393 = vld [vmem:[%s3 + $0x118] sm:$0xff]
      %v394 = vld [vmem:[%s3 + $0x120] sm:$0xff]
      %v395 = vld [vmem:[%s3 + $0x128] sm:$0xff]
      %v396 = vld [vmem:[%s3 + $0x130] sm:$0xff]
      %v397 = vld [vmem:[%s3 + $0x138] sm:$0xff]
      %v398 = vld [vmem:[%s3 + $0x140] sm:$0xff]
      %v399 = vld [vmem:[%s3 + $0x148] sm:$0xff]
      %v400 = vld [vmem:[%s3 + $0x150] sm:$0xff]
      %v401 = vld [vmem:[%s3 + $0x158] sm:$0xff]
      %v402 = vld [vmem:[%s3 + $0x160] sm:$0xff]
      %v403 = vld [vmem:[%s3 + $0x168] sm:$0xff]
      %v404 = vld [vmem:[%s3 + $0x170] sm:$0xff]
      %v405 = vld [vmem:[%s3 + $0x178] sm:$0xff]
      %v406 = vld [vmem:[%s3 + $0x180] sm:$0xff]
      %v407 = vld [vmem:[%s3 + $0x188] sm:$0xff]
      %v408 = vld [vmem:[%s3 + $0x190] sm:$0xff]
      %v409 = vld [vmem:[%s3 + $0x198] sm:$0xff]
      %v410 = vld [vmem:[%s3 + $0x1a0] sm:$0xff]
      %v411 = vld [vmem:[%s3 + $0x1a8] sm:$0xff]
      %v412 = vld [vmem:[%s3 + $0x1b0] sm:$0xff]
      %v413 = vld [vmem:[%s3 + $0x1b8] sm:$0xff]
      %v414 = vld [vmem:[%s3 + $0x1c0] sm:$0xff]
      %v415 = vld [vmem:[%s3 + $0x1c8] sm:$0xff]
      %v416 = vld [vmem:[%s3 + $0x1d0] sm:$0xff]
      %v417 = vld [vmem:[%s3 + $0x1d8] sm:$0xff]
      %v418 = vld [vmem:[%s3 + $0x1e0] sm:$0xff]
      %v419 = vld [vmem:[%s3 + $0x1e8] sm:$0xff]
      %v420 = vld [vmem:[%s3 + $0x1f0] sm:$0xff]
      %v421 = vld [vmem:[%s3 + $0x1f8] sm:$0xff]
      %v422 = vld [vmem:[#allocation2] sm:$0xfe]
      %v423 = vld [vmem:[#allocation2 + $0x8] sm:$0xfe]
      %v424 = vld [vmem:[#allocation2 + $0x10] sm:$0x1]
      %v425 = vld [vmem:[#allocation2 + $0x18] sm:$0x1]
      %s426 = scalar_lea.vmem %s3, 512
      %v427 = vld [vmem:[%s426] sm:$0xff]
      %v428 = vld [vmem:[%s426 + $0x8] sm:$0xff]
      %v429 = vld [vmem:[%s426 + $0x10] sm:$0xff]
      %v430 = vld [vmem:[%s426 + $0x18] sm:$0xff]
      %v431 = vld [vmem:[%s426 + $0x20] sm:$0xff]
      %v432 = vld [vmem:[%s426 + $0x28] sm:$0xff]
      %v433 = vld [vmem:[%s426 + $0x30] sm:$0xff]
      %v434 = vld [vmem:[%s426 + $0x38] sm:$0xff]
      %v435 = vld [vmem:[%s426 + $0x40] sm:$0xff]
      %v436 = vld [vmem:[%s426 + $0x48] sm:$0xff]
      %v437 = vld [vmem:[%s426 + $0x50] sm:$0xff]
      %v438 = vld [vmem:[%s426 + $0x58] sm:$0xff]
      %v439 = vld [vmem:[%s426 + $0x60] sm:$0xff]
      %v440 = vld [vmem:[%s426 + $0x68] sm:$0xff]
      %v441 = vld [vmem:[%s426 + $0x70] sm:$0xff]
      %v442 = vld [vmem:[%s426 + $0x78] sm:$0xff]
      %v443 = vld [vmem:[%s426 + $0x80] sm:$0xff]
      %v444 = vld [vmem:[%s426 + $0x88] sm:$0xff]
      %v445 = vld [vmem:[%s426 + $0x90] sm:$0xff]
      %v446 = vld [vmem:[%s426 + $0x98] sm:$0xff]
      %v447 = vld [vmem:[%s426 + $0xa0] sm:$0xff]
      %v448 = vld [vmem:[%s426 + $0xa8] sm:$0xff]
      %v449 = vld [vmem:[%s426 + $0xb0] sm:$0xff]
      %v450 = vld [vmem:[%s426 + $0xb8] sm:$0xff]
      %v451 = vld [vmem:[%s426 + $0xc0] sm:$0xff]
      %v452 = vld [vmem:[%s426 + $0xc8] sm:$0xff]
      %v453 = vld [vmem:[%s426 + $0xd0] sm:$0xff]
      %v454 = vld [vmem:[%s426 + $0xd8] sm:$0xff]
      %v455 = vld [vmem:[%s426 + $0xe0] sm:$0xff]
      %v456 = vld [vmem:[%s426 + $0xe8] sm:$0xff]
      %v457 = vld [vmem:[%s426 + $0xf0] sm:$0xff]
      %v458 = vld [vmem:[%s426 + $0xf8] sm:$0xff]
      %v459 = vld [vmem:[%s426 + $0x100] sm:$0xff]
      %v460 = vld [vmem:[%s426 + $0x108] sm:$0xff]
      %v461 = vld [vmem:[%s426 + $0x110] sm:$0xff]
      %v462 = vld [vmem:[%s426 + $0x118] sm:$0xff]
      %v463 = vld [vmem:[%s426 + $0x120] sm:$0xff]
      %v464 = vld [vmem:[%s426 + $0x128] sm:$0xff]
      %v465 = vld [vmem:[%s426 + $0x130] sm:$0xff]
      %v466 = vld [vmem:[%s426 + $0x138] sm:$0xff]
      %v467 = vld [vmem:[%s426 + $0x140] sm:$0xff]
      %v468 = vld [vmem:[%s426 + $0x148] sm:$0xff]
      %v469 = vld [vmem:[%s426 + $0x150] sm:$0xff]
      %v470 = vld [vmem:[%s426 + $0x158] sm:$0xff]
      %v471 = vld [vmem:[%s426 + $0x160] sm:$0xff]
      %v472 = vld [vmem:[%s426 + $0x168] sm:$0xff]
      %v473 = vld [vmem:[%s426 + $0x170] sm:$0xff]
      %v474 = vld [vmem:[%s426 + $0x178] sm:$0xff]
      %v475 = vld [vmem:[%s426 + $0x180] sm:$0xff]
      %v476 = vld [vmem:[%s426 + $0x188] sm:$0xff]
      %v477 = vld [vmem:[%s426 + $0x190] sm:$0xff]
      %v478 = vld [vmem:[%s426 + $0x198] sm:$0xff]
      %v479 = vld [vmem:[%s426 + $0x1a0] sm:$0xff]
      %v480 = vld [vmem:[%s426 + $0x1a8] sm:$0xff]
      %v481 = vld [vmem:[%s426 + $0x1b0] sm:$0xff]
      %v482 = vld [vmem:[%s426 + $0x1b8] sm:$0xff]
      %v483 = vld [vmem:[%s426 + $0x1c0] sm:$0xff]
      %v484 = vld [vmem:[%s426 + $0x1c8] sm:$0xff]
      %v485 = vld [vmem:[%s426 + $0x1d0] sm:$0xff]
      %v486 = vld [vmem:[%s426 + $0x1d8] sm:$0xff]
      %v487 = vld [vmem:[%s426 + $0x1e0] sm:$0xff]
      %v488 = vld [vmem:[%s426 + $0x1e8] sm:$0xff]
      %v489 = vld [vmem:[%s426 + $0x1f0] sm:$0xff]
      %v490 = vld [vmem:[%s426 + $0x1f8] sm:$0xff]
      %vm495 = vcmask 1046528
      %v496 = vrot.slane %v422, 1
      %v497 = vrot.slane %v424, 1
      %v498 = vsel %vm495, %v496, %v497
      %v499 = vrot.slane %v423, 1
      %v500 = vrot.slane %v425, 1
      %v501 = vsel %vm495, %v499, %v500
      %504 = vmatprep.subr.mxu0 %v428
      %505 = vmatpush1.msra.mxu0 %v427
      %506 = vmatprep.subr.mxu0 %v430
      %507 = vmatpush1.msra.mxu0 %v429
      %508 = vmatprep.subr.mxu0 %v432
      %509 = vmatpush1.msra.mxu0 %v431
      %510 = vmatprep.subr.mxu0 %v434
      %511 = vmatpush1.msra.mxu0 %v433
      %512 = vmatprep.subr.mxu0 %v436
      %513 = vmatpush1.msra.mxu0 %v435
      %514 = vmatprep.subr.mxu0 %v438
      %515 = vmatpush1.msra.mxu0 %v437
      %516 = vmatprep.subr.mxu0 %v440
      %517 = vmatpush1.msra.mxu0 %v439
      %518 = vmatprep.subr.mxu0 %v442
      %519 = vmatpush1.msra.mxu0 %v441
      %520 = vmatprep.subr.mxu0 %v444
      %521 = vmatpush1.msra.mxu0 %v443
      %522 = vmatprep.subr.mxu0 %v446
      %523 = vmatpush1.msra.mxu0 %v445
      %524 = vmatprep.subr.mxu0 %v448
      %525 = vmatpush1.msra.mxu0 %v447
      %526 = vmatprep.subr.mxu0 %v450
      %527 = vmatpush1.msra.mxu0 %v449
      %528 = vmatprep.subr.mxu0 %v452
      %529 = vmatpush1.msra.mxu0 %v451
      %530 = vmatprep.subr.mxu0 %v454
      %531 = vmatpush1.msra.mxu0 %v453
      %532 = vmatprep.subr.mxu0 %v456
      %533 = vmatpush1.msra.mxu0 %v455
      %534 = vmatprep.subr.mxu0 %v458
      %535 = vmatpush1.msra.mxu0 %v457
      %536 = vmatprep.subr.mxu0 %v460
      %537 = vmatpush1.msra.mxu0 %v459
      %538 = vmatprep.subr.mxu0 %v462
      %539 = vmatpush1.msra.mxu0 %v461
      %540 = vmatprep.subr.mxu0 %v464
      %541 = vmatpush1.msra.mxu0 %v463
      %542 = vmatprep.subr.mxu0 %v466
      %543 = vmatpush1.msra.mxu0 %v465
      %544 = vmatprep.subr.mxu0 %v468
      %545 = vmatpush1.msra.mxu0 %v467
      %546 = vmatprep.subr.mxu0 %v470
      %547 = vmatpush1.msra.mxu0 %v469
      %548 = vmatprep.subr.mxu0 %v472
      %549 = vmatpush1.msra.mxu0 %v471
      %550 = vmatprep.subr.mxu0 %v474
      %551 = vmatpush1.msra.mxu0 %v473
      %552 = vmatprep.subr.mxu0 %v476
      %553 = vmatpush1.msra.mxu0 %v475
      %554 = vmatprep.subr.mxu0 %v478
      %555 = vmatpush1.msra.mxu0 %v477
      %556 = vmatprep.subr.mxu0 %v480
      %557 = vmatpush1.msra.mxu0 %v479
      %558 = vmatprep.subr.mxu0 %v482
      %559 = vmatpush1.msra.mxu0 %v481
      %560 = vmatprep.subr.mxu0 %v484
      %561 = vmatpush1.msra.mxu0 %v483
      %562 = vmatprep.subr.mxu0 %v486
      %563 = vmatpush1.msra.mxu0 %v485
      %564 = vmatprep.subr.mxu0 %v488
      %565 = vmatpush1.msra.mxu0 %v487
      %566 = vmatprep.subr.mxu0 %v490
      %567 = vmatpush1.msra.mxu0 %v489
      %568 = vmatprep.mubr.f32.mxu0 %v501
      %569 = vmatmul.mubr.f32.gmra.mrb[0].mxu0 %v498
      %v570 = vpop.f32.mrb[0].mxu0
      %v571 = vadd.f32 0.0, %v570
      %v572 = vpop.f32.mrb[0].mxu0
      %v573 = vadd.f32 0.0, %v572
      %574 = vdwg.mxu0
      %575 = vmatprep.subr.mxu0 %v359
      %576 = vmatpush1.msra.mxu0 %v358
      %577 = vmatprep.subr.mxu0 %v361
      %578 = vmatpush1.msra.mxu0 %v360
      %579 = vmatprep.subr.mxu0 %v363
      %580 = vmatpush1.msra.mxu0 %v362
      %581 = vmatprep.subr.mxu0 %v365
      %582 = vmatpush1.msra.mxu0 %v364
      %583 = vmatprep.subr.mxu0 %v367
      %584 = vmatpush1.msra.mxu0 %v366
      %585 = vmatprep.subr.mxu0 %v369
      %586 = vmatpush1.msra.mxu0 %v368
      %587 = vmatprep.subr.mxu0 %v371
      %588 = vmatpush1.msra.mxu0 %v370
      %589 = vmatprep.subr.mxu0 %v373
      %590 = vmatpush1.msra.mxu0 %v372
      %591 = vmatprep.subr.mxu0 %v375
      %592 = vmatpush1.msra.mxu0 %v374
      %593 = vmatprep.subr.mxu0 %v377
      %594 = vmatpush1.msra.mxu0 %v376
      %595 = vmatprep.subr.mxu0 %v379
      %596 = vmatpush1.msra.mxu0 %v378
      %597 = vmatprep.subr.mxu0 %v381
      %598 = vmatpush1.msra.mxu0 %v380
      %599 = vmatprep.subr.mxu0 %v383
      %600 = vmatpush1.msra.mxu0 %v382
      %601 = vmatprep.subr.mxu0 %v385
      %602 = vmatpush1.msra.mxu0 %v384
      %603 = vmatprep.subr.mxu0 %v387
      %604 = vmatpush1.msra.mxu0 %v386
      %605 = vmatprep.subr.mxu0 %v389
      %606 = vmatpush1.msra.mxu0 %v388
      %607 = vmatprep.subr.mxu0 %v391
      %608 = vmatpush1.msra.mxu0 %v390
      %609 = vmatprep.subr.mxu0 %v393
      %610 = vmatpush1.msra.mxu0 %v392
      %611 = vmatprep.subr.mxu0 %v395
      %612 = vmatpush1.msra.mxu0 %v394
      %613 = vmatprep.subr.mxu0 %v397
      %614 = vmatpush1.msra.mxu0 %v396
      %615 = vmatprep.subr.mxu0 %v399
      %616 = vmatpush1.msra.mxu0 %v398
      %617 = vmatprep.subr.mxu0 %v401
      %618 = vmatpush1.msra.mxu0 %v400
      %619 = vmatprep.subr.mxu0 %v403
      %620 = vmatpush1.msra.mxu0 %v402
      %621 = vmatprep.subr.mxu0 %v405
      %622 = vmatpush1.msra.mxu0 %v404
      %623 = vmatprep.subr.mxu0 %v407
      %624 = vmatpush1.msra.mxu0 %v406
      %625 = vmatprep.subr.mxu0 %v409
      %626 = vmatpush1.msra.mxu0 %v408
      %627 = vmatprep.subr.mxu0 %v411
      %628 = vmatpush1.msra.mxu0 %v410
      %629 = vmatprep.subr.mxu0 %v413
      %630 = vmatpush1.msra.mxu0 %v412
      %631 = vmatprep.subr.mxu0 %v415
      %632 = vmatpush1.msra.mxu0 %v414
      %633 = vmatprep.subr.mxu0 %v417
      %634 = vmatpush1.msra.mxu0 %v416
      %635 = vmatprep.subr.mxu0 %v419
      %636 = vmatpush1.msra.mxu0 %v418
      %637 = vmatprep.subr.mxu0 %v421
      %638 = vmatpush1.msra.mxu0 %v420
      %639 = vmatprep.mubr.f32.mxu0 %v357
      %640 = vmatmul.mubr.f32.gmra.mrb[0].mxu0 %v356
      %v641 = vpop.f32.mrb[0].mxu0
      %v642 = vadd.f32 %v571, %v641
      %v643 = vpop.f32.mrb[0].mxu0
      %v644 = vadd.f32 %v573, %v643
      %645 = vdwg.mxu0
      %v646 = vld [vmem:[#allocation2] sm:$0xfc]
      %v647 = vld [vmem:[#allocation2 + $0x8] sm:$0xfc]
      %v648 = vld [vmem:[#allocation2 + $0x10] sm:$0x3]
      %v649 = vld [vmem:[#allocation2 + $0x18] sm:$0x3]
      %s650 = scalar_lea.vmem %s3, 1024
      %v651 = vld [vmem:[%s650] sm:$0xff]
      %v652 = vld [vmem:[%s650 + $0x8] sm:$0xff]
      %v653 = vld [vmem:[%s650 + $0x10] sm:$0xff]
      %v654 = vld [vmem:[%s650 + $0x18] sm:$0xff]
      %v655 = vld [vmem:[%s650 + $0x20] sm:$0xff]
      %v656 = vld [vmem:[%s650 + $0x28] sm:$0xff]
      %v657 = vld [vmem:[%s650 + $0x30] sm:$0xff]
      %v658 = vld [vmem:[%s650 + $0x38] sm:$0xff]
      %v659 = vld [vmem:[%s650 + $0x40] sm:$0xff]
      %v660 = vld [vmem:[%s650 + $0x48] sm:$0xff]
      %v661 = vld [vmem:[%s650 + $0x50] sm:$0xff]
      %v662 = vld [vmem:[%s650 + $0x58] sm:$0xff]
      %v663 = vld [vmem:[%s650 + $0x60] sm:$0xff]
      %v664 = vld [vmem:[%s650 + $0x68] sm:$0xff]
      %v665 = vld [vmem:[%s650 + $0x70] sm:$0xff]
      %v666 = vld [vmem:[%s650 + $0x78] sm:$0xff]
      %v667 = vld [vmem:[%s650 + $0x80] sm:$0xff]
      %v668 = vld [vmem:[%s650 + $0x88] sm:$0xff]
      %v669 = vld [vmem:[%s650 + $0x90] sm:$0xff]
      %v670 = vld [vmem:[%s650 + $0x98] sm:$0xff]
      %v671 = vld [vmem:[%s650 + $0xa0] sm:$0xff]
      %v672 = vld [vmem:[%s650 + $0xa8] sm:$0xff]
      %v673 = vld [vmem:[%s650 + $0xb0] sm:$0xff]
      %v674 = vld [vmem:[%s650 + $0xb8] sm:$0xff]
      %v675 = vld [vmem:[%s650 + $0xc0] sm:$0xff]
      %v676 = vld [vmem:[%s650 + $0xc8] sm:$0xff]
      %v677 = vld [vmem:[%s650 + $0xd0] sm:$0xff]
      %v678 = vld [vmem:[%s650 + $0xd8] sm:$0xff]
      %v679 = vld [vmem:[%s650 + $0xe0] sm:$0xff]
      %v680 = vld [vmem:[%s650 + $0xe8] sm:$0xff]
      %v681 = vld [vmem:[%s650 + $0xf0] sm:$0xff]
      %v682 = vld [vmem:[%s650 + $0xf8] sm:$0xff]
      %v683 = vld [vmem:[%s650 + $0x100] sm:$0xff]
      %v684 = vld [vmem:[%s650 + $0x108] sm:$0xff]
      %v685 = vld [vmem:[%s650 + $0x110] sm:$0xff]
      %v686 = vld [vmem:[%s650 + $0x118] sm:$0xff]
      %v687 = vld [vmem:[%s650 + $0x120] sm:$0xff]
      %v688 = vld [vmem:[%s650 + $0x128] sm:$0xff]
      %v689 = vld [vmem:[%s650 + $0x130] sm:$0xff]
      %v690 = vld [vmem:[%s650 + $0x138] sm:$0xff]
      %v691 = vld [vmem:[%s650 + $0x140] sm:$0xff]
      %v692 = vld [vmem:[%s650 + $0x148] sm:$0xff]
      %v693 = vld [vmem:[%s650 + $0x150] sm:$0xff]
      %v694 = vld [vmem:[%s650 + $0x158] sm:$0xff]
      %v695 = vld [vmem:[%s650 + $0x160] sm:$0xff]
      %v696 = vld [vmem:[%s650 + $0x168] sm:$0xff]
      %v697 = vld [vmem:[%s650 + $0x170] sm:$0xff]
      %v698 = vld [vmem:[%s650 + $0x178] sm:$0xff]
      %v699 = vld [vmem:[%s650 + $0x180] sm:$0xff]
      %v700 = vld [vmem:[%s650 + $0x188] sm:$0xff]
      %v701 = vld [vmem:[%s650 + $0x190] sm:$0xff]
      %v702 = vld [vmem:[%s650 + $0x198] sm:$0xff]
      %v703 = vld [vmem:[%s650 + $0x1a0] sm:$0xff]
      %v704 = vld [vmem:[%s650 + $0x1a8] sm:$0xff]
      %v705 = vld [vmem:[%s650 + $0x1b0] sm:$0xff]
      %v706 = vld [vmem:[%s650 + $0x1b8] sm:$0xff]
      %v707 = vld [vmem:[%s650 + $0x1c0] sm:$0xff]
      %v708 = vld [vmem:[%s650 + $0x1c8] sm:$0xff]
      %v709 = vld [vmem:[%s650 + $0x1d0] sm:$0xff]
      %v710 = vld [vmem:[%s650 + $0x1d8] sm:$0xff]
      %v711 = vld [vmem:[%s650 + $0x1e0] sm:$0xff]
      %v712 = vld [vmem:[%s650 + $0x1e8] sm:$0xff]
      %v713 = vld [vmem:[%s650 + $0x1f0] sm:$0xff]
      %v714 = vld [vmem:[%s650 + $0x1f8] sm:$0xff]
      %vm719 = vcmask 1045504
      %v720 = vrot.slane %v646, 2
      %v721 = vrot.slane %v648, 2
      %v722 = vsel %vm719, %v720, %v721
      %v723 = vrot.slane %v647, 2
      %v724 = vrot.slane %v649, 2
      %v725 = vsel %vm719, %v723, %v724
      %728 = vmatprep.subr.mxu0 %v652
      %729 = vmatpush1.msra.mxu0 %v651
      %730 = vmatprep.subr.mxu0 %v654
      %731 = vmatpush1.msra.mxu0 %v653
      %732 = vmatprep.subr.mxu0 %v656
      %733 = vmatpush1.msra.mxu0 %v655
      %734 = vmatprep.subr.mxu0 %v658
      %735 = vmatpush1.msra.mxu0 %v657
      %736 = vmatprep.subr.mxu0 %v660
      %737 = vmatpush1.msra.mxu0 %v659
      %738 = vmatprep.subr.mxu0 %v662
      %739 = vmatpush1.msra.mxu0 %v661
      %740 = vmatprep.subr.mxu0 %v664
      %741 = vmatpush1.msra.mxu0 %v663
      %742 = vmatprep.subr.mxu0 %v666
      %743 = vmatpush1.msra.mxu0 %v665
      %744 = vmatprep.subr.mxu0 %v668
      %745 = vmatpush1.msra.mxu0 %v667
      %746 = vmatprep.subr.mxu0 %v670
      %747 = vmatpush1.msra.mxu0 %v669
      %748 = vmatprep.subr.mxu0 %v672
      %749 = vmatpush1.msra.mxu0 %v671
      %750 = vmatprep.subr.mxu0 %v674
      %751 = vmatpush1.msra.mxu0 %v673
      %752 = vmatprep.subr.mxu0 %v676
      %753 = vmatpush1.msra.mxu0 %v675
      %754 = vmatprep.subr.mxu0 %v678
      %755 = vmatpush1.msra.mxu0 %v677
      %756 = vmatprep.subr.mxu0 %v680
      %757 = vmatpush1.msra.mxu0 %v679
      %758 = vmatprep.subr.mxu0 %v682
      %759 = vmatpush1.msra.mxu0 %v681
      %760 = vmatprep.subr.mxu0 %v684
      %761 = vmatpush1.msra.mxu0 %v683
      %762 = vmatprep.subr.mxu0 %v686
      %763 = vmatpush1.msra.mxu0 %v685
      %764 = vmatprep.subr.mxu0 %v688
      %765 = vmatpush1.msra.mxu0 %v687
      %766 = vmatprep.subr.mxu0 %v690
      %767 = vmatpush1.msra.mxu0 %v689
      %768 = vmatprep.subr.mxu0 %v692
      %769 = vmatpush1.msra.mxu0 %v691
      %770 = vmatprep.subr.mxu0 %v694
      %771 = vmatpush1.msra.mxu0 %v693
      %772 = vmatprep.subr.mxu0 %v696
      %773 = vmatpush1.msra.mxu0 %v695
      %774 = vmatprep.subr.mxu0 %v698
      %775 = vmatpush1.msra.mxu0 %v697
      %776 = vmatprep.subr.mxu0 %v700
      %777 = vmatpush1.msra.mxu0 %v699
      %778 = vmatprep.subr.mxu0 %v702
      %779 = vmatpush1.msra.mxu0 %v701
      %780 = vmatprep.subr.mxu0 %v704
      %781 = vmatpush1.msra.mxu0 %v703
      %782 = vmatprep.subr.mxu0 %v706
      %783 = vmatpush1.msra.mxu0 %v705
      %784 = vmatprep.subr.mxu0 %v708
      %785 = vmatpush1.msra.mxu0 %v707
      %786 = vmatprep.subr.mxu0 %v710
      %787 = vmatpush1.msra.mxu0 %v709
      %788 = vmatprep.subr.mxu0 %v712
      %789 = vmatpush1.msra.mxu0 %v711
      %790 = vmatprep.subr.mxu0 %v714
      %791 = vmatpush1.msra.mxu0 %v713
      %792 = vmatprep.mubr.f32.mxu0 %v725
      %793 = vmatmul.mubr.f32.gmra.mrb[0].mxu0 %v722
      %v794 = vpop.f32.mrb[0].mxu0
      %v795 = vadd.f32 0.0, %v794
      %v796 = vpop.f32.mrb[0].mxu0
      %v797 = vadd.f32 0.0, %v796
      %798 = vdwg.mxu0
      %v799 = vadd.f32 %v642, %v795
      %v800 = vadd.f32 %v644, %v797
      %v801 = vld [vmem:[#allocation2] sm:$0xf8]
      %v802 = vld [vmem:[#allocation2 + $0x8] sm:$0xf8]
      %v803 = vld [vmem:[#allocation2 + $0x10] sm:$0x7]
      %v804 = vld [vmem:[#allocation2 + $0x18] sm:$0x7]
      %s805 = scalar_lea.vmem %s3, 1536
      %v806 = vld [vmem:[%s805] sm:$0xff]
      %v807 = vld [vmem:[%s805 + $0x8] sm:$0xff]
      %v808 = vld [vmem:[%s805 + $0x10] sm:$0xff]
      %v809 = vld [vmem:[%s805 + $0x18] sm:$0xff]
      %v810 = vld [vmem:[%s805 + $0x20] sm:$0xff]
      %v811 = vld [vmem:[%s805 + $0x28] sm:$0xff]
      %v812 = vld [vmem:[%s805 + $0x30] sm:$0xff]
      %v813 = vld [vmem:[%s805 + $0x38] sm:$0xff]
      %v814 = vld [vmem:[%s805 + $0x40] sm:$0xff]
      %v815 = vld [vmem:[%s805 + $0x48] sm:$0xff]
      %v816 = vld [vmem:[%s805 + $0x50] sm:$0xff]
      %v817 = vld [vmem:[%s805 + $0x58] sm:$0xff]
      %v818 = vld [vmem:[%s805 + $0x60] sm:$0xff]
      %v819 = vld [vmem:[%s805 + $0x68] sm:$0xff]
      %v820 = vld [vmem:[%s805 + $0x70] sm:$0xff]
      %v821 = vld [vmem:[%s805 + $0x78] sm:$0xff]
      %v822 = vld [vmem:[%s805 + $0x80] sm:$0xff]
      %v823 = vld [vmem:[%s805 + $0x88] sm:$0xff]
      %v824 = vld [vmem:[%s805 + $0x90] sm:$0xff]
      %v825 = vld [vmem:[%s805 + $0x98] sm:$0xff]
      %v826 = vld [vmem:[%s805 + $0xa0] sm:$0xff]
      %v827 = vld [vmem:[%s805 + $0xa8] sm:$0xff]
      %v828 = vld [vmem:[%s805 + $0xb0] sm:$0xff]
      %v829 = vld [vmem:[%s805 + $0xb8] sm:$0xff]
      %v830 = vld [vmem:[%s805 + $0xc0] sm:$0xff]
      %v831 = vld [vmem:[%s805 + $0xc8] sm:$0xff]
      %v832 = vld [vmem:[%s805 + $0xd0] sm:$0xff]
      %v833 = vld [vmem:[%s805 + $0xd8] sm:$0xff]
      %v834 = vld [vmem:[%s805 + $0xe0] sm:$0xff]
      %v835 = vld [vmem:[%s805 + $0xe8] sm:$0xff]
      %v836 = vld [vmem:[%s805 + $0xf0] sm:$0xff]
      %v837 = vld [vmem:[%s805 + $0xf8] sm:$0xff]
      %v838 = vld [vmem:[%s805 + $0x100] sm:$0xff]
      %v839 = vld [vmem:[%s805 + $0x108] sm:$0xff]
      %v840 = vld [vmem:[%s805 + $0x110] sm:$0xff]
      %v841 = vld [vmem:[%s805 + $0x118] sm:$0xff]
      %v842 = vld [vmem:[%s805 + $0x120] sm:$0xff]
      %v843 = vld [vmem:[%s805 + $0x128] sm:$0xff]
      %v844 = vld [vmem:[%s805 + $0x130] sm:$0xff]
      %v845 = vld [vmem:[%s805 + $0x138] sm:$0xff]
      %v846 = vld [vmem:[%s805 + $0x140] sm:$0xff]
      %v847 = vld [vmem:[%s805 + $0x148] sm:$0xff]
      %v848 = vld [vmem:[%s805 + $0x150] sm:$0xff]
      %v849 = vld [vmem:[%s805 + $0x158] sm:$0xff]
      %v850 = vld [vmem:[%s805 + $0x160] sm:$0xff]
      %v851 = vld [vmem:[%s805 + $0x168] sm:$0xff]
      %v852 = vld [vmem:[%s805 + $0x170] sm:$0xff]
      %v853 = vld [vmem:[%s805 + $0x178] sm:$0xff]
      %v854 = vld [vmem:[%s805 + $0x180] sm:$0xff]
      %v855 = vld [vmem:[%s805 + $0x188] sm:$0xff]
      %v856 = vld [vmem:[%s805 + $0x190] sm:$0xff]
      %v857 = vld [vmem:[%s805 + $0x198] sm:$0xff]
      %v858 = vld [vmem:[%s805 + $0x1a0] sm:$0xff]
      %v859 = vld [vmem:[%s805 + $0x1a8] sm:$0xff]
      %v860 = vld [vmem:[%s805 + $0x1b0] sm:$0xff]
      %v861 = vld [vmem:[%s805 + $0x1b8] sm:$0xff]
      %v862 = vld [vmem:[%s805 + $0x1c0] sm:$0xff]
      %v863 = vld [vmem:[%s805 + $0x1c8] sm:$0xff]
      %v864 = vld [vmem:[%s805 + $0x1d0] sm:$0xff]
      %v865 = vld [vmem:[%s805 + $0x1d8] sm:$0xff]
      %v866 = vld [vmem:[%s805 + $0x1e0] sm:$0xff]
      %v867 = vld [vmem:[%s805 + $0x1e8] sm:$0xff]
      %v868 = vld [vmem:[%s805 + $0x1f0] sm:$0xff]
      %v869 = vld [vmem:[%s805 + $0x1f8] sm:$0xff]
      %vm874 = vcmask 1044480
      %v875 = vrot.slane %v801, 3
      %v876 = vrot.slane %v803, 3
      %v877 = vsel %vm874, %v875, %v876
      %v878 = vrot.slane %v802, 3
      %v879 = vrot.slane %v804, 3
      %v880 = vsel %vm874, %v878, %v879
      %883 = vmatprep.subr.mxu0 %v807
      %884 = vmatpush1.msra.mxu0 %v806
      %885 = vmatprep.subr.mxu0 %v809
      %886 = vmatpush1.msra.mxu0 %v808
      %887 = vmatprep.subr.mxu0 %v811
      %888 = vmatpush1.msra.mxu0 %v810
      %889 = vmatprep.subr.mxu0 %v813
      %890 = vmatpush1.msra.mxu0 %v812
      %891 = vmatprep.subr.mxu0 %v815
      %892 = vmatpush1.msra.mxu0 %v814
      %893 = vmatprep.subr.mxu0 %v817
      %894 = vmatpush1.msra.mxu0 %v816
      %895 = vmatprep.subr.mxu0 %v819
      %896 = vmatpush1.msra.mxu0 %v818
      %897 = vmatprep.subr.mxu0 %v821
      %898 = vmatpush1.msra.mxu0 %v820
      %899 = vmatprep.subr.mxu0 %v823
      %900 = vmatpush1.msra.mxu0 %v822
      %901 = vmatprep.subr.mxu0 %v825
      %902 = vmatpush1.msra.mxu0 %v824
      %903 = vmatprep.subr.mxu0 %v827
      %904 = vmatpush1.msra.mxu0 %v826
      %905 = vmatprep.subr.mxu0 %v829
      %906 = vmatpush1.msra.mxu0 %v828
      %907 = vmatprep.subr.mxu0 %v831
      %908 = vmatpush1.msra.mxu0 %v830
      %909 = vmatprep.subr.mxu0 %v833
      %910 = vmatpush1.msra.mxu0 %v832
      %911 = vmatprep.subr.mxu0 %v835
      %912 = vmatpush1.msra.mxu0 %v834
      %913 = vmatprep.subr.mxu0 %v837
      %914 = vmatpush1.msra.mxu0 %v836
      %915 = vmatprep.subr.mxu0 %v839
      %916 = vmatpush1.msra.mxu0 %v838
      %917 = vmatprep.subr.mxu0 %v841
      %918 = vmatpush1.msra.mxu0 %v840
      %919 = vmatprep.subr.mxu0 %v843
      %920 = vmatpush1.msra.mxu0 %v842
      %921 = vmatprep.subr.mxu0 %v845
      %922 = vmatpush1.msra.mxu0 %v844
      %923 = vmatprep.subr.mxu0 %v847
      %924 = vmatpush1.msra.mxu0 %v846
      %925 = vmatprep.subr.mxu0 %v849
      %926 = vmatpush1.msra.mxu0 %v848
      %927 = vmatprep.subr.mxu0 %v851
      %928 = vmatpush1.msra.mxu0 %v850
      %929 = vmatprep.subr.mxu0 %v853
      %930 = vmatpush1.msra.mxu0 %v852
      %931 = vmatprep.subr.mxu0 %v855
      %932 = vmatpush1.msra.mxu0 %v854
      %933 = vmatprep.subr.mxu0 %v857
      %934 = vmatpush1.msra.mxu0 %v856
      %935 = vmatprep.subr.mxu0 %v859
      %936 = vmatpush1.msra.mxu0 %v858
      %937 = vmatprep.subr.mxu0 %v861
      %938 = vmatpush1.msra.mxu0 %v860
      %939 = vmatprep.subr.mxu0 %v863
      %940 = vmatpush1.msra.mxu0 %v862
      %941 = vmatprep.subr.mxu0 %v865
      %942 = vmatpush1.msra.mxu0 %v864
      %943 = vmatprep.subr.mxu0 %v867
      %944 = vmatpush1.msra.mxu0 %v866
      %945 = vmatprep.subr.mxu0 %v869
      %946 = vmatpush1.msra.mxu0 %v868
      %947 = vmatprep.mubr.f32.mxu0 %v880
      %948 = vmatmul.mubr.f32.gmra.mrb[0].mxu0 %v877
      %v949 = vpop.f32.mrb[0].mxu0
      %v950 = vadd.f32 0.0, %v949
      %v951 = vpop.f32.mrb[0].mxu0
      %v952 = vadd.f32 0.0, %v951
      %953 = vdwg.mxu0
      %v954 = vadd.f32 %v799, %v950
      %v955 = vadd.f32 %v800, %v952
      %v956 = vld [vmem:[#allocation2] sm:$0xf0]
      %v957 = vld [vmem:[#allocation2 + $0x8] sm:$0xf0]
      %v958 = vld [vmem:[#allocation2 + $0x10] sm:$0xf]
      %v959 = vld [vmem:[#allocation2 + $0x18] sm:$0xf]
      %s960 = scalar_lea.vmem %s3, 2048
      %v961 = vld [vmem:[%s960] sm:$0xff]
      %v962 = vld [vmem:[%s960 + $0x8] sm:$0xff]
      %v963 = vld [vmem:[%s960 + $0x10] sm:$0xff]
      %v964 = vld [vmem:[%s960 + $0x18] sm:$0xff]
      %v965 = vld [vmem:[%s960 + $0x20] sm:$0xff]
      %v966 = vld [vmem:[%s960 + $0x28] sm:$0xff]
      %v967 = vld [vmem:[%s960 + $0x30] sm:$0xff]
      %v968 = vld [vmem:[%s960 + $0x38] sm:$0xff]
      %v969 = vld [vmem:[%s960 + $0x40] sm:$0xff]
      %v970 = vld [vmem:[%s960 + $0x48] sm:$0xff]
      %v971 = vld [vmem:[%s960 + $0x50] sm:$0xff]
      %v972 = vld [vmem:[%s960 + $0x58] sm:$0xff]
      %v973 = vld [vmem:[%s960 + $0x60] sm:$0xff]
      %v974 = vld [vmem:[%s960 + $0x68] sm:$0xff]
      %v975 = vld [vmem:[%s960 + $0x70] sm:$0xff]
      %v976 = vld [vmem:[%s960 + $0x78] sm:$0xff]
      %v977 = vld [vmem:[%s960 + $0x80] sm:$0xff]
      %v978 = vld [vmem:[%s960 + $0x88] sm:$0xff]
      %v979 = vld [vmem:[%s960 + $0x90] sm:$0xff]
      %v980 = vld [vmem:[%s960 + $0x98] sm:$0xff]
      %v981 = vld [vmem:[%s960 + $0xa0] sm:$0xff]
      %v982 = vld [vmem:[%s960 + $0xa8] sm:$0xff]
      %v983 = vld [vmem:[%s960 + $0xb0] sm:$0xff]
      %v984 = vld [vmem:[%s960 + $0xb8] sm:$0xff]
      %v985 = vld [vmem:[%s960 + $0xc0] sm:$0xff]
      %v986 = vld [vmem:[%s960 + $0xc8] sm:$0xff]
      %v987 = vld [vmem:[%s960 + $0xd0] sm:$0xff]
      %v988 = vld [vmem:[%s960 + $0xd8] sm:$0xff]
      %v989 = vld [vmem:[%s960 + $0xe0] sm:$0xff]
      %v990 = vld [vmem:[%s960 + $0xe8] sm:$0xff]
      %v991 = vld [vmem:[%s960 + $0xf0] sm:$0xff]
      %v992 = vld [vmem:[%s960 + $0xf8] sm:$0xff]
      %v993 = vld [vmem:[%s960 + $0x100] sm:$0xff]
      %v994 = vld [vmem:[%s960 + $0x108] sm:$0xff]
      %v995 = vld [vmem:[%s960 + $0x110] sm:$0xff]
      %v996 = vld [vmem:[%s960 + $0x118] sm:$0xff]
      %v997 = vld [vmem:[%s960 + $0x120] sm:$0xff]
      %v998 = vld [vmem:[%s960 + $0x128] sm:$0xff]
      %v999 = vld [vmem:[%s960 + $0x130] sm:$0xff]
      %v1000 = vld [vmem:[%s960 + $0x138] sm:$0xff]
      %v1001 = vld [vmem:[%s960 + $0x140] sm:$0xff]
      %v1002 = vld [vmem:[%s960 + $0x148] sm:$0xff]
      %v1003 = vld [vmem:[%s960 + $0x150] sm:$0xff]
      %v1004 = vld [vmem:[%s960 + $0x158] sm:$0xff]
      %v1005 = vld [vmem:[%s960 + $0x160] sm:$0xff]
      %v1006 = vld [vmem:[%s960 + $0x168] sm:$0xff]
      %v1007 = vld [vmem:[%s960 + $0x170] sm:$0xff]
      %v1008 = vld [vmem:[%s960 + $0x178] sm:$0xff]
      %v1009 = vld [vmem:[%s960 + $0x180] sm:$0xff]
      %v1010 = vld [vmem:[%s960 + $0x188] sm:$0xff]
      %v1011 = vld [vmem:[%s960 + $0x190] sm:$0xff]
      %v1012 = vld [vmem:[%s960 + $0x198] sm:$0xff]
      %v1013 = vld [vmem:[%s960 + $0x1a0] sm:$0xff]
      %v1014 = vld [vmem:[%s960 + $0x1a8] sm:$0xff]
      %v1015 = vld [vmem:[%s960 + $0x1b0] sm:$0xff]
      %v1016 = vld [vmem:[%s960 + $0x1b8] sm:$0xff]
      %v1017 = vld [vmem:[%s960 + $0x1c0] sm:$0xff]
      %v1018 = vld [vmem:[%s960 + $0x1c8] sm:$0xff]
      %v1019 = vld [vmem:[%s960 + $0x1d0] sm:$0xff]
      %v1020 = vld [vmem:[%s960 + $0x1d8] sm:$0xff]
      %v1021 = vld [vmem:[%s960 + $0x1e0] sm:$0xff]
      %v1022 = vld [vmem:[%s960 + $0x1e8] sm:$0xff]
      %v1023 = vld [vmem:[%s960 + $0x1f0] sm:$0xff]
      %v1024 = vld [vmem:[%s960 + $0x1f8] sm:$0xff]
      %vm1029 = vcmask 1043456
      %v1030 = vrot.slane %v956, 4
      %v1031 = vrot.slane %v958, 4
      %v1032 = vsel %vm1029, %v1030, %v1031
      %v1033 = vrot.slane %v957, 4
      %v1034 = vrot.slane %v959, 4
      %v1035 = vsel %vm1029, %v1033, %v1034
      %1038 = vmatprep.subr.mxu0 %v962
      %1039 = vmatpush1.msra.mxu0 %v961
      %1040 = vmatprep.subr.mxu0 %v964
      %1041 = vmatpush1.msra.mxu0 %v963
      %1042 = vmatprep.subr.mxu0 %v966
      %1043 = vmatpush1.msra.mxu0 %v965
      %1044 = vmatprep.subr.mxu0 %v968
      %1045 = vmatpush1.msra.mxu0 %v967
      %1046 = vmatprep.subr.mxu0 %v970
      %1047 = vmatpush1.msra.mxu0 %v969
      %1048 = vmatprep.subr.mxu0 %v972
      %1049 = vmatpush1.msra.mxu0 %v971
      %1050 = vmatprep.subr.mxu0 %v974
      %1051 = vmatpush1.msra.mxu0 %v973
      %1052 = vmatprep.subr.mxu0 %v976
      %1053 = vmatpush1.msra.mxu0 %v975
      %1054 = vmatprep.subr.mxu0 %v978
      %1055 = vmatpush1.msra.mxu0 %v977
      %1056 = vmatprep.subr.mxu0 %v980
      %1057 = vmatpush1.msra.mxu0 %v979
      %1058 = vmatprep.subr.mxu0 %v982
      %1059 = vmatpush1.msra.mxu0 %v981
      %1060 = vmatprep.subr.mxu0 %v984
      %1061 = vmatpush1.msra.mxu0 %v983
      %1062 = vmatprep.subr.mxu0 %v986
      %1063 = vmatpush1.msra.mxu0 %v985
      %1064 = vmatprep.subr.mxu0 %v988
      %1065 = vmatpush1.msra.mxu0 %v987
      %1066 = vmatprep.subr.mxu0 %v990
      %1067 = vmatpush1.msra.mxu0 %v989
      %1068 = vmatprep.subr.mxu0 %v992
      %1069 = vmatpush1.msra.mxu0 %v991
      %1070 = vmatprep.subr.mxu0 %v994
      %1071 = vmatpush1.msra.mxu0 %v993
      %1072 = vmatprep.subr.mxu0 %v996
      %1073 = vmatpush1.msra.mxu0 %v995
      %1074 = vmatprep.subr.mxu0 %v998
      %1075 = vmatpush1.msra.mxu0 %v997
      %1076 = vmatprep.subr.mxu0 %v1000
      %1077 = vmatpush1.msra.mxu0 %v999
      %1078 = vmatprep.subr.mxu0 %v1002
      %1079 = vmatpush1.msra.mxu0 %v1001
      %1080 = vmatprep.subr.mxu0 %v1004
      %1081 = vmatpush1.msra.mxu0 %v1003
      %1082 = vmatprep.subr.mxu0 %v1006
      %1083 = vmatpush1.msra.mxu0 %v1005
      %1084 = vmatprep.subr.mxu0 %v1008
      %1085 = vmatpush1.msra.mxu0 %v1007
      %1086 = vmatprep.subr.mxu0 %v1010
      %1087 = vmatpush1.msra.mxu0 %v1009
      %1088 = vmatprep.subr.mxu0 %v1012
      %1089 = vmatpush1.msra.mxu0 %v1011
      %1090 = vmatprep.subr.mxu0 %v1014
      %1091 = vmatpush1.msra.mxu0 %v1013
      %1092 = vmatprep.subr.mxu0 %v1016
      %1093 = vmatpush1.msra.mxu0 %v1015
      %1094 = vmatprep.subr.mxu0 %v1018
      %1095 = vmatpush1.msra.mxu0 %v1017
      %1096 = vmatprep.subr.mxu0 %v1020
      %1097 = vmatpush1.msra.mxu0 %v1019
      %1098 = vmatprep.subr.mxu0 %v1022
      %1099 = vmatpush1.msra.mxu0 %v1021
      %1100 = vmatprep.subr.mxu0 %v1024
      %1101 = vmatpush1.msra.mxu0 %v1023
      %1102 = vmatprep.mubr.f32.mxu0 %v1035
      %1103 = vmatmul.mubr.f32.gmra.mrb[0].mxu0 %v1032
      %v1104 = vpop.f32.mrb[0].mxu0
      %v1105 = vadd.f32 0.0, %v1104
      %v1106 = vpop.f32.mrb[0].mxu0
      %v1107 = vadd.f32 0.0, %v1106
      %1108 = vdwg.mxu0
      %v1109 = vadd.f32 %v954, %v1105
      %v1110 = vadd.f32 %v955, %v1107
      %v1111 = vld [vmem:[%s4] sm:$0x3]
      %v1113 = vlaneseq
      %v1114 = vshrl.u32 %v1113, 7
      %v1115 = vsub.s32 0, %v1114
      %v1116 = vrot.slane %v1111, %v1115
      %v1117 = vlaneseq
      %v1118 = vshrl.u32 %v1117, 7
      %v1119 = vsub.s32 1, %v1118
      %v1120 = vrot.slane %v1111, %v1119
      %v1123 = vadd.f32 %v1109, %v1116
      %v1124 = vadd.f32 %v1110, %v1120
      %v1125 = vmax.f32 %v1123, 0.0
      %v1126 = vmax.f32 %v1124, 0.0
      %1127 = vst [vmem:[%s224] sm:$0xff] %v1125
      %1128 = vst [vmem:[%s224 + $0x8] sm:$0xff] %v1126
      %p1129 = scmp.lt.s32.totalorder %s16, 1
      %s1130 = scalar_select %p1129, %s16, 1
      %s1131 = smul.addr %s1130, 2
      %s1132 = smul.addr %s1131, 8
      %s1133 = scalar_lea.vmem %s5, %s1132
      // Predicated region
      $region41: #{model_forward.1} parent=39 // pred_check
        %p1134 = pneg %p144
      $region42: #{model_forward.1} parent=39 // pred_check_branch
        %1136 = sbr.rel (%p1134) target = $region44
      $region43: #{model_forward.1} parent=39 // pred_region
        _
      $region44: #{model_forward.1} parent=39 // pred_fallthru
        _
    $region40: #{model_forward.1} parent=5 // pred_fallthru
      _
    %p1137 = scmp.le.s32.totalorder 2, %s11
    // Predicated region
    $region45: #{model_forward.1} parent=5 // pred_check
      %p1138 = pneg %p1137
    $region46: #{model_forward.1} parent=5 // pred_check_branch
      %1140 = sbr.rel (%p1138) target = $region48
    $region47: #{model_forward.1} parent=5 // pred_region
      %s1141 = ssub.s32 %s11, 2
      // Predicated region
      $region49: #{model_forward.1} parent=47 // pred_check
        %p1142 = pneg %p150
      $region50: #{model_forward.1} parent=47 // pred_check_branch
        %1144 = sbr.rel (%p1142) target = $region52
      $region51: #{model_forward.1} parent=47 // pred_region
        %p1145 = scmp.lt.s32.totalorder %s17, 1
        %s1146 = scalar_select %p1145, %s17, 1
        %s1147 = smul.addr %s1146, 2
        %s1148 = smul.addr %s1147, 8
        %s1149 = scalar_lea.vmem %s5, %s1148
      $region52: #{model_forward.1} parent=47 // pred_fallthru
        _
    $region48: #{model_forward.1} parent=5 // pred_fallthru
      _
  $region6: #{model_forward.1} parent=0 // loop_footer
    %s15 = sadd.s32 1, %s11
  $region7: #{model_forward.1} parent=0 // loop_footer_branch
    %10 = sbr.rel target = $region3
  $region8: #{model_forward.1} parent=0 // loop_exit
    _

</llo_original>
